<compile_context>
chip_gen: v7x
topology: tpu7x:2x2x1
jax: 0.10.0
libtpu: 0.0.40
codegen_flags: <defaults>
</compile_context>

<pallas_src>
import functools

import jax
import jax.numpy as jnp
from jax import lax
from jax.experimental import pallas as pl
from jax.experimental.pallas import tpu as pltpu

LANE = 128  # TPU lane width: pad node dim AND all feature (last) dims to this


def _round_up(x, m):
    return (x + m - 1) // m * m


def _vmem_limit_bytes():
    """Generation-aware scoped-VMEM limit with headroom."""
    cap = None
    try:
        info = pltpu.get_tpu_info()
        cap = getattr(info, "vmem_capacity_bytes", None)
    except Exception:  # query unavailable -> conservative fallback
        cap = None
    if not cap:
        cap = 64 * 1024 * 1024  # safe on every generation (v7x physical VMEM)
    # ~3/4 of physical, capped at 100 MiB: ~96 MiB on v5e/v6e, ~48 MiB on v7x.
    return min(int(cap * 3 // 4), 100 * 1024 * 1024)


# ---------------------------------------------------------------------------
# Fused kernel: all GAT layers + final Linear in one body (single block, VMEM)
# ---------------------------------------------------------------------------
def _fused_gat_kernel(n_real, num_layers, compute_dtype, x_ref, *refs):
    """refs = [w0, b0, a0, w1, b1, a1, ..., w_out, b_out, out_ref]."""
    out_ref = refs[-1]
    prm = refs[:-1]

    n_pad = x_ref.shape[0]

    # Padded node rows have h == bias after the first Linear (non-zero), so
    # phantom columns must be excluded from every row-softmax.  Additive mask
    # (0 / -1e30) is built once, in f32, and simply added each layer.
    if n_real < n_pad:
        col_ids = lax.broadcasted_iota(jnp.int32, (n_pad, n_pad), 1)
        mask_add = jnp.where(col_ids < n_real, 0.0, -1e30).astype(jnp.float32)
    else:
        mask_add = None

    h = x_ref[...]                       # f32 [Np, Fp]
    h_c = h.astype(compute_dtype)        # hoisted MXU-operand copy

    for l in range(num_layers):
        w = prm[3 * l][...].astype(compute_dtype)
        b = prm[3 * l + 1][...]          # f32 bias, added post-accumulation
        a = prm[3 * l + 2][...].astype(compute_dtype)

        # nn.Linear: h = x @ W^T + b   (W pre-transposed to [in, out])
        h = jnp.dot(h_c, w, preferred_element_type=jnp.float32) + b
        h_c = h.astype(compute_dtype)    # single cast, reused 3x below

        # scores = h @ (A @ h^T) == (h @ A) @ h^T.  The transpose is folded
        # into dot_general (contract dim 1 with dim 1): no XLU transpose,
        # no VMEM copy of h^T.
        ha = jnp.dot(h_c, a, preferred_element_type=jnp.float32)
        scores = lax.dot_general(
            ha.astype(compute_dtype), h_c,
            dimension_numbers=(((1,), (1,)), ((), ())),
            preferred_element_type=jnp.float32)

        # Numerically-stable softmax over dim=1, stats always in f32.
        if mask_add is not None:
            scores = scores + mask_add
        scores = scores - jnp.max(scores, axis=1, keepdims=True)
        p = jnp.exp(scores)
        denom = jnp.sum(p, axis=1, keepdims=True)
        # EUP approximate reciprocal + one Newton step (near-exact, VPU slack).
        r = pl.reciprocal(denom, approx=True)
        r = r * (2.0 - denom * r)
        p = p * r

        # h_agg = attention @ h
        h = jnp.dot(p.astype(compute_dtype), h_c,
                    preferred_element_type=jnp.float32)
        h_c = h.astype(compute_dtype)

    # Final nn.Linear
    w_out = prm[3 * num_layers][...].astype(compute_dtype)
    b_out = prm[3 * num_layers + 1][...]
    out = jnp.dot(h_c, w_out, preferred_element_type=jnp.float32) + b_out
    out_ref[...] = out.astype(out_ref.dtype)


# ---------------------------------------------------------------------------
# Wrapper: pad to lane-dense shapes, one pallas_call, slice the result
# ---------------------------------------------------------------------------
def graph_attention_network(graph, node_features, params,
                            *, compute_dtype=jnp.bfloat16):
    """Mirrors GraphAttentionNetwork.forward.  `graph` is unused, exactly as
    in the PyTorch reference.  Default compute_dtype=bf16 uses the MXU's fast
    path with f32 accumulation; pass jnp.float32 for reference-exact math."""
    del graph
    n, f_in = node_features.shape
    num_layers = len(params["layers"])

    n_pad = _round_up(max(n, LANE), LANE)      # lane-dense NxN score path
    f_pad = _round_up(max(f_in, LANE), LANE)

    x_p = jnp.zeros((n_pad, f_pad), jnp.float32).at[:n, :f_in].set(node_features)

    args = [x_p]
    in_pad = f_pad
    for (w_t, b, a) in params["layers"]:
        in_dim, h_dim = w_t.shape
        h_pad = _round_up(max(h_dim, LANE), LANE)
        w_p = jnp.zeros((in_pad, h_pad), jnp.float32).at[:in_dim, :h_dim].set(w_t)
        b_p = jnp.zeros((1, h_pad), jnp.float32).at[:, :h_dim].set(b)
        a_p = jnp.zeros((h_pad, h_pad), jnp.float32).at[:h_dim, :h_dim].set(a)
        args += [w_p, b_p, a_p]
        in_pad = h_pad

    w_out, b_out = params["out"]
    h_dim, o_dim = w_out.shape
    o_pad = _round_up(max(o_dim, LANE), LANE)
    w_out_p = jnp.zeros((in_pad, o_pad), jnp.float32).at[:h_dim, :o_dim].set(w_out)
    b_out_p = jnp.zeros((1, o_pad), jnp.float32).at[:, :o_dim].set(b_out)
    args += [w_out_p, b_out_p]

    kernel = functools.partial(_fused_gat_kernel, n, num_layers, compute_dtype)

    out_p = pl.pallas_call(
        kernel,
        out_shape=jax.ShapeDtypeStruct((n_pad, o_pad), jnp.float32),
        in_specs=[pl.BlockSpec(memory_space=pltpu.MemorySpace.VMEM)] * len(args),
        out_specs=pl.BlockSpec(memory_space=pltpu.MemorySpace.VMEM),
        compiler_params=pltpu.CompilerParams(
            vmem_limit_bytes=_vmem_limit_bytes()),
    )(*args)

    return out_p[:n, :o_dim]


# ---------------------------------------------------------------------------
# Pure-JAX reference (for correctness check) and parameter construction
# ---------------------------------------------------------------------------
def _reference(node_features, params):
    h = node_features
    for (w_t, b, a) in params["layers"]:
        h = h @ w_t + b
        scores = h @ (a @ h.T)
        scores = jax.nn.softmax(scores, axis=1)
        h = scores @ h
    w_t, b = params["out"]
    return h @ w_t + b


def init_params(key, in_features, hidden_features, out_features, num_layers):
    layers = []
    fan_in = in_features
    for _ in range(num_layers):
        key, kw, kb, ka = jax.random.split(key, 4)
        bound = 1.0 / jnp.sqrt(fan_in)
        w_t = jax.random.uniform(kw, (fan_in, hidden_features), jnp.float32,
                                 -bound, bound)
        b = jax.random.uniform(kb, (1, hidden_features), jnp.float32,
                               -bound, bound)
        attn_w = jax.random.normal(ka, (hidden_features, hidden_features),
                                   jnp.float32)
        layers.append((w_t, b, attn_w))
        fan_in = hidden_features

    key, kw, kb = jax.random.split(key, 3)
    bound = 1.0 / jnp.sqrt(hidden_features)
    out_w_t = jax.random.uniform(kw, (hidden_features, out_features),
                                 jnp.float32, -bound, bound)
    out_b = jax.random.uniform(kb, (1, out_features), jnp.float32,
                               -bound, bound)
    return {"layers": layers, "out": (out_w_t, out_b)}


# ---------------------------------------------------------------------------
if __name__ == "__main__":
    key = jax.random.PRNGKey(0)
    num_nodes = 16
    in_features = 8
    hidden_features = 32
    out_features = 8
    num_layers = 2

    key, k_x, k_g, k_p = jax.random.split(key, 4)
    node_features = jax.random.normal(k_x, (num_nodes, in_features), jnp.float32)
    graph = (jax.random.uniform(k_g, (num_nodes, num_nodes)) > 0.5).astype(jnp.float32)

    params = init_params(k_p, in_features, hidden_features, out_features,
                         num_layers)

    ref = _reference(node_features, params)

    # f32 compute path: must match the pure-JAX / PyTorch reference tightly
    # (approx reciprocal is Newton-refined, matmuls accumulate in f32).
    out_f32 = graph_attention_network(graph, node_features, params,
                                      compute_dtype=jnp.float32)
    out_f32 = jax.block_until_ready(out_f32)
    assert out_f32.shape == (num_nodes, out_features), out_f32.shape
    assert bool(jnp.all(jnp.isfinite(out_f32)))
    assert bool(jnp.allclose(out_f32, ref, rtol=1e-2, atol=1e-2)), (
        float(jnp.max(jnp.abs(out_f32 - ref))))

    # Default (bf16 MXU operands, f32 accumulation) fast path: check shape and
    # finiteness only -- the softmax over large-magnitude scores is sensitive
    # to bf16 rounding, so no tight elementwise comparison is asserted here.
    out_bf16 = graph_attention_network(graph, node_features, params)
    out_bf16 = jax.block_until_ready(out_bf16)
    assert out_bf16.shape == (num_nodes, out_features), out_bf16.shape
    assert bool(jnp.all(jnp.isfinite(out_bf16)))

    print("KERNEL_OK")
</pallas_src>

<mosaic_0001>
module attributes {stable_mosaic.version = 11 : i64} {
  func.func @_fused_gat_kernel(%arg0: memref<128x128xf32, #tpu.memory_space<vmem>>, %arg1: memref<128x128xf32, #tpu.memory_space<vmem>>, %arg2: memref<1x128xf32, #tpu.memory_space<vmem>>, %arg3: memref<128x128xf32, #tpu.memory_space<vmem>>, %arg4: memref<128x128xf32, #tpu.memory_space<vmem>>, %arg5: memref<1x128xf32, #tpu.memory_space<vmem>>, %arg6: memref<128x128xf32, #tpu.memory_space<vmem>>, %arg7: memref<128x128xf32, #tpu.memory_space<vmem>>, %arg8: memref<1x128xf32, #tpu.memory_space<vmem>>, %arg9: memref<128x128xf32, #tpu.memory_space<vmem>>) attributes {dimension_semantics = [], scalar_prefetch = 0 : i64, scratch_operands = 0 : i64, tpu.core_type = #tpu.core_type<tc>} {
    %0 = tpu.iota {dimensions = array<i32: 1>} : vector<128x128xi32>
    %c16_i32 = arith.constant 16 : i32
    %1 = vector.broadcast %c16_i32 : i32 to vector<128x128xi32>
    %2 = arith.cmpi slt, %0, %1 : vector<128x128xi32>
    %cst = arith.constant 0.000000e+00 : f32
    %cst_0 = arith.constant -1.000000e+30 : f32
    %3 = vector.broadcast %cst : f32 to vector<128x128xf32>
    %4 = vector.broadcast %cst_0 : f32 to vector<128x128xf32>
    %5 = arith.select %2, %3, %4 : vector<128x128xi1>, vector<128x128xf32>
    %c0 = arith.constant 0 : index
    %c0_1 = arith.constant 0 : index
    %6 = vector.load %arg0[%c0, %c0_1] : memref<128x128xf32, #tpu.memory_space<vmem>>, vector<128x128xf32>
    %c0_2 = arith.constant 0 : index
    %c0_3 = arith.constant 0 : index
    %7 = vector.load %arg1[%c0_2, %c0_3] : memref<128x128xf32, #tpu.memory_space<vmem>>, vector<128x128xf32>
    %c0_4 = arith.constant 0 : index
    %c0_5 = arith.constant 0 : index
    %8 = vector.load %arg2[%c0_4, %c0_5] : memref<1x128xf32, #tpu.memory_space<vmem>>, vector<1x128xf32>
    %c0_6 = arith.constant 0 : index
    %c0_7 = arith.constant 0 : index
    %9 = vector.load %arg3[%c0_6, %c0_7] : memref<128x128xf32, #tpu.memory_space<vmem>>, vector<128x128xf32>
    %cst_8 = arith.constant dense<0.000000e+00> : vector<128x128xf32>
    %10 = tpu.matmul %6, %7, %cst_8 {dimension_numbers = #tpu.dot_dimension_numbers<[1], [0], [0], [1], [0, 0, 1, 1], [], []>} : vector<128x128xf32>, vector<128x128xf32>, vector<128x128xf32> -> vector<128x128xf32>
    %11 = vector.broadcast %8 : vector<1x128xf32> to vector<128x128xf32>
    %12 = arith.addf %10, %11 : vector<128x128xf32>
    %cst_9 = arith.constant dense<0.000000e+00> : vector<128x128xf32>
    %13 = tpu.matmul %12, %9, %cst_9 {dimension_numbers = #tpu.dot_dimension_numbers<[1], [0], [0], [1], [0, 0, 1, 1], [], []>} : vector<128x128xf32>, vector<128x128xf32>, vector<128x128xf32> -> vector<128x128xf32>
    %cst_10 = arith.constant dense<0.000000e+00> : vector<128x128xf32>
    %14 = tpu.matmul %13, %12, %cst_10 {dimension_numbers = #tpu.dot_dimension_numbers<[1], [1], [0], [0], [0, 0, 1, 0], [], []>} : vector<128x128xf32>, vector<128x128xf32>, vector<128x128xf32> -> vector<128x128xf32>
    %15 = arith.addf %14, %5 : vector<128x128xf32>
    %cst_11 = arith.constant dense<0xFF800000> : vector<128xf32>
    %16 = vector.multi_reduction <maximumf>, %15, %cst_11 [1] : vector<128x128xf32> to vector<128xf32>
    %17 = vector.shape_cast %16 : vector<128xf32> to vector<128x1xf32>
    %18 = vector.broadcast %17 : vector<128x1xf32> to vector<128x128xf32>
    %19 = arith.subf %15, %18 : vector<128x128xf32>
    %20 = math.exp %19 : vector<128x128xf32>
    %cst_12 = arith.constant dense<0.000000e+00> : vector<128xf32>
    %21 = vector.multi_reduction <add>, %20, %cst_12 [1] : vector<128x128xf32> to vector<128xf32>
    %22 = vector.shape_cast %21 : vector<128xf32> to vector<128x1xf32>
    %23 = tpu.reciprocal %22 {approx = true} : vector<128x1xf32> -> vector<128x1xf32>
    %24 = arith.mulf %22, %23 : vector<128x1xf32>
    %cst_13 = arith.constant 2.000000e+00 : f32
    %25 = vector.broadcast %cst_13 : f32 to vector<128x1xf32>
    %26 = arith.subf %25, %24 : vector<128x1xf32>
    %27 = arith.mulf %23, %26 : vector<128x1xf32>
    %28 = vector.broadcast %27 : vector<128x1xf32> to vector<128x128xf32>
    %29 = arith.mulf %20, %28 : vector<128x128xf32>
    %cst_14 = arith.constant dense<0.000000e+00> : vector<128x128xf32>
    %30 = tpu.matmul %29, %12, %cst_14 {dimension_numbers = #tpu.dot_dimension_numbers<[1], [0], [0], [1], [0, 0, 1, 1], [], []>} : vector<128x128xf32>, vector<128x128xf32>, vector<128x128xf32> -> vector<128x128xf32>
    %c0_15 = arith.constant 0 : index
    %c0_16 = arith.constant 0 : index
    %31 = vector.load %arg4[%c0_15, %c0_16] : memref<128x128xf32, #tpu.memory_space<vmem>>, vector<128x128xf32>
    %c0_17 = arith.constant 0 : index
    %c0_18 = arith.constant 0 : index
    %32 = vector.load %arg5[%c0_17, %c0_18] : memref<1x128xf32, #tpu.memory_space<vmem>>, vector<1x128xf32>
    %c0_19 = arith.constant 0 : index
    %c0_20 = arith.constant 0 : index
    %33 = vector.load %arg6[%c0_19, %c0_20] : memref<128x128xf32, #tpu.memory_space<vmem>>, vector<128x128xf32>
    %cst_21 = arith.constant dense<0.000000e+00> : vector<128x128xf32>
    %34 = tpu.matmul %30, %31, %cst_21 {dimension_numbers = #tpu.dot_dimension_numbers<[1], [0], [0], [1], [0, 0, 1, 1], [], []>} : vector<128x128xf32>, vector<128x128xf32>, vector<128x128xf32> -> vector<128x128xf32>
    %35 = vector.broadcast %32 : vector<1x128xf32> to vector<128x128xf32>
    %36 = arith.addf %34, %35 : vector<128x128xf32>
    %cst_22 = arith.constant dense<0.000000e+00> : vector<128x128xf32>
    %37 = tpu.matmul %36, %33, %cst_22 {dimension_numbers = #tpu.dot_dimension_numbers<[1], [0], [0], [1], [0, 0, 1, 1], [], []>} : vector<128x128xf32>, vector<128x128xf32>, vector<128x128xf32> -> vector<128x128xf32>
    %cst_23 = arith.constant dense<0.000000e+00> : vector<128x128xf32>
    %38 = tpu.matmul %37, %36, %cst_23 {dimension_numbers = #tpu.dot_dimension_numbers<[1], [1], [0], [0], [0, 0, 1, 0], [], []>} : vector<128x128xf32>, vector<128x128xf32>, vector<128x128xf32> -> vector<128x128xf32>
    %39 = arith.addf %38, %5 : vector<128x128xf32>
    %cst_24 = arith.constant dense<0xFF800000> : vector<128xf32>
    %40 = vector.multi_reduction <maximumf>, %39, %cst_24 [1] : vector<128x128xf32> to vector<128xf32>
    %41 = vector.shape_cast %40 : vector<128xf32> to vector<128x1xf32>
    %42 = vector.broadcast %41 : vector<128x1xf32> to vector<128x128xf32>
    %43 = arith.subf %39, %42 : vector<128x128xf32>
    %44 = math.exp %43 : vector<128x128xf32>
    %cst_25 = arith.constant dense<0.000000e+00> : vector<128xf32>
    %45 = vector.multi_reduction <add>, %44, %cst_25 [1] : vector<128x128xf32> to vector<128xf32>
    %46 = vector.shape_cast %45 : vector<128xf32> to vector<128x1xf32>
    %47 = tpu.reciprocal %46 {approx = true} : vector<128x1xf32> -> vector<128x1xf32>
    %48 = arith.mulf %46, %47 : vector<128x1xf32>
    %cst_26 = arith.constant 2.000000e+00 : f32
    %49 = vector.broadcast %cst_26 : f32 to vector<128x1xf32>
    %50 = arith.subf %49, %48 : vector<128x1xf32>
    %51 = arith.mulf %47, %50 : vector<128x1xf32>
    %52 = vector.broadcast %51 : vector<128x1xf32> to vector<128x128xf32>
    %53 = arith.mulf %44, %52 : vector<128x128xf32>
    %cst_27 = arith.constant dense<0.000000e+00> : vector<128x128xf32>
    %54 = tpu.matmul %53, %36, %cst_27 {dimension_numbers = #tpu.dot_dimension_numbers<[1], [0], [0], [1], [0, 0, 1, 1], [], []>} : vector<128x128xf32>, vector<128x128xf32>, vector<128x128xf32> -> vector<128x128xf32>
    %c0_28 = arith.constant 0 : index
    %c0_29 = arith.constant 0 : index
    %55 = vector.load %arg7[%c0_28, %c0_29] : memref<128x128xf32, #tpu.memory_space<vmem>>, vector<128x128xf32>
    %c0_30 = arith.constant 0 : index
    %c0_31 = arith.constant 0 : index
    %56 = vector.load %arg8[%c0_30, %c0_31] : memref<1x128xf32, #tpu.memory_space<vmem>>, vector<1x128xf32>
    %cst_32 = arith.constant dense<0.000000e+00> : vector<128x128xf32>
    %57 = tpu.matmul %54, %55, %cst_32 {dimension_numbers = #tpu.dot_dimension_numbers<[1], [0], [0], [1], [0, 0, 1, 1], [], []>} : vector<128x128xf32>, vector<128x128xf32>, vector<128x128xf32> -> vector<128x128xf32>
    %58 = vector.broadcast %56 : vector<1x128xf32> to vector<128x128xf32>
    %59 = arith.addf %57, %58 : vector<128x128xf32>
    %c0_33 = arith.constant 0 : index
    %c0_34 = arith.constant 0 : index
    %60 = vector.load %arg9[%c0_33, %c0_34] : memref<128x128xf32, #tpu.memory_space<vmem>>, vector<128x128xf32>
    tpu.vector_store %arg9[%c0_33, %c0_34], %59 {strides = array<i32>} : memref<128x128xf32, #tpu.memory_space<vmem>>, vector<128x128xf32>,
    return
  }
}

</mosaic_0001>

<llo_original>
// kernel: tpu_custom_call.1
$region0: #{tpu_custom_call.1}
  #allocation0 [shape = 'u32[]', space=smem, size = 0x4, offset = 0x4, fixed_abs, tag = 'smem constant byte address 0x4 - core index']
  #allocation1 [shape = 'u32[144,128]{1,0:T(1,128)}', space=vmem, size = 0x12000, scoped, tag = 'internal scratch']
  %s0 = inlined_call_operand.hbm [shape: f32[128,128], index: 0, kind: input, shape index: {}]
  %s1 = inlined_call_operand.hbm [shape: f32[128,128], index: 1, kind: input, shape index: {}]
  %s2 = inlined_call_operand.vmem [shape: f32[1,128], index: 2, kind: input, shape index: {}]
  %s3 = inlined_call_operand.hbm [shape: f32[128,128], index: 3, kind: input, shape index: {}]
  %s4 = inlined_call_operand.hbm [shape: f32[128,128], index: 4, kind: input, shape index: {}]
  %s5 = inlined_call_operand.vmem [shape: f32[1,128], index: 5, kind: input, shape index: {}]
  %s6 = inlined_call_operand.hbm [shape: f32[128,128], index: 6, kind: input, shape index: {}]
  %s7 = inlined_call_operand.hbm [shape: f32[128,128], index: 7, kind: input, shape index: {}]
  %s8 = inlined_call_operand.vmem [shape: f32[1,128], index: 8, kind: input, shape index: {}]
  %s9 = inlined_call_operand.hbm [shape: f32[128,128], index: 9, kind: output, shape index: {}]
  %s10 = sld [smem:[#allocation0]]
  $region70: #{tpu_custom_call.1} parent=0
    _
  %s12 = ssub.s32 1, %s10
  %s13 = scalar_select 0, %s12, %s10
  $region1: #{tpu_custom_call.1} parent=0
    #allocation2 [shape = 'u8[65536]{0}', space=vmem, size = 0x10000, scoped, tag = 'input window, operand 0, single buffered']
    #allocation3 [shape = 's32[1]{0}', space=sflag, size = 0x4, scoped, tag = 'scoped memory for tpu_custom_call.1']
    #allocation4 [shape = 's32[1]{0}', space=sflag, size = 0x4, scoped, tag = 'scoped memory for tpu_custom_call.1']
    #allocation5 [shape = 'u8[65536]{0}', space=vmem, size = 0x10000, scoped, tag = 'input window, operand 1, single buffered']
    #allocation6 [shape = 's32[1]{0}', space=sflag, size = 0x4, scoped, tag = 'scoped memory for tpu_custom_call.1']
    #allocation7 [shape = 'u8[65536]{0}', space=vmem, size = 0x10000, scoped, tag = 'input window, operand 3, single buffered']
    #allocation8 [shape = 'u8[65536]{0}', space=vmem, size = 0x10000, scoped, tag = 'input window, operand 4, single buffered']
    #allocation9 [shape = 's32[1]{0}', space=sflag, size = 0x4, scoped, tag = 'scoped memory for tpu_custom_call.1']
    #allocation10 [shape = 'u8[65536]{0}', space=vmem, size = 0x10000, scoped, tag = 'input window, operand 6, single buffered']
    #allocation11 [shape = 'u8[65536]{0}', space=vmem, size = 0x10000, scoped, tag = 'input window, operand 7, single buffered']
    #allocation12 [shape = 's32[1]{0}', space=sflag, size = 0x4, scoped, tag = 'scoped memory for tpu_custom_call.1']
    #allocation13 [shape = 'u8[65536]{0}', space=vmem, size = 0x10000, scoped, tag = 'output window, operand 0, single buffered']
    %14 = vsyncpa [#allocation3], 0
    %15 = vsyncpa [#allocation6], 0
    %16 = vsyncpa [#allocation9], 0
    %17 = vsyncpa [#allocation12], 0
    %18 = vsyncpa [#allocation4], 0
    // Predicated region
    $region2: #{tpu_custom_call.1} parent=1 // pred_check
      _
    $region3: #{tpu_custom_call.1} parent=1 // pred_check_branch
      %20 = sbr.rel (0) target = $region5
    $region4: #{tpu_custom_call.1} parent=1 // pred_region
      %s22 = ssub.s32 2048, 2048
      %23 = vsyncadd [#allocation3], %s22
      %s24 = sshll.u32 [#allocation2], 4
      %s25 = int_to_ptr.vmem [resolvable:$true] %s24
      %30 = dma.hbm_to_vmem [thread:$0]  %s0, 2048, %s25, [#allocation3], 128, 128, 8
    $region5: #{tpu_custom_call.1} parent=1 // pred_fallthru
      _
    // Predicated region
    $region6: #{tpu_custom_call.1} parent=1 // pred_check
      _
    $region7: #{tpu_custom_call.1} parent=1 // pred_check_branch
      %32 = sbr.rel (0) target = $region9
    $region8: #{tpu_custom_call.1} parent=1 // pred_region
      %s34 = ssub.s32 2048, 2048
      %35 = vsyncadd [#allocation6], %s34
      %s36 = sshll.u32 [#allocation5], 4
      %s37 = int_to_ptr.vmem [resolvable:$true] %s36
      %42 = dma.hbm_to_vmem [thread:$0]  %s1, 2048, %s37, [#allocation6], 128, 128, 8
    $region9: #{tpu_custom_call.1} parent=1 // pred_fallthru
      _
    // Predicated region
    $region10: #{tpu_custom_call.1} parent=1 // pred_check
      _
    $region11: #{tpu_custom_call.1} parent=1 // pred_check_branch
      %44 = sbr.rel (0) target = $region13
    $region12: #{tpu_custom_call.1} parent=1 // pred_region
      _
    $region13: #{tpu_custom_call.1} parent=1 // pred_fallthru
      _
    // Predicated region
    $region14: #{tpu_custom_call.1} parent=1 // pred_check
      _
    $region15: #{tpu_custom_call.1} parent=1 // pred_check_branch
      %46 = sbr.rel (0) target = $region17
    $region16: #{tpu_custom_call.1} parent=1 // pred_region
      %s48 = ssub.s32 2048, 2048
      %49 = vsyncadd [#allocation6], %s48
      %s50 = sshll.u32 [#allocation7], 4
      %s51 = int_to_ptr.vmem [resolvable:$true] %s50
      %56 = dma.hbm_to_vmem [thread:$0]  %s3, 2048, %s51, [#allocation6], 128, 128, 8
    $region17: #{tpu_custom_call.1} parent=1 // pred_fallthru
      _
    // Predicated region
    $region18: #{tpu_custom_call.1} parent=1 // pred_check
      _
    $region19: #{tpu_custom_call.1} parent=1 // pred_check_branch
      %58 = sbr.rel (0) target = $region21
    $region20: #{tpu_custom_call.1} parent=1 // pred_region
      %s60 = ssub.s32 2048, 2048
      %61 = vsyncadd [#allocation9], %s60
      %s62 = sshll.u32 [#allocation8], 4
      %s63 = int_to_ptr.vmem [resolvable:$true] %s62
      %68 = dma.hbm_to_vmem [thread:$0]  %s4, 2048, %s63, [#allocation9], 128, 128, 8
    $region21: #{tpu_custom_call.1} parent=1 // pred_fallthru
      _
    // Predicated region
    $region22: #{tpu_custom_call.1} parent=1 // pred_check
      _
    $region23: #{tpu_custom_call.1} parent=1 // pred_check_branch
      %70 = sbr.rel (0) target = $region25
    $region24: #{tpu_custom_call.1} parent=1 // pred_region
      _
    $region25: #{tpu_custom_call.1} parent=1 // pred_fallthru
      _
    // Predicated region
    $region26: #{tpu_custom_call.1} parent=1 // pred_check
      _
    $region27: #{tpu_custom_call.1} parent=1 // pred_check_branch
      %72 = sbr.rel (0) target = $region29
    $region28: #{tpu_custom_call.1} parent=1 // pred_region
      %s74 = ssub.s32 2048, 2048
      %75 = vsyncadd [#allocation9], %s74
      %s76 = sshll.u32 [#allocation10], 4
      %s77 = int_to_ptr.vmem [resolvable:$true] %s76
      %82 = dma.hbm_to_vmem [thread:$0]  %s6, 2048, %s77, [#allocation9], 128, 128, 8
    $region29: #{tpu_custom_call.1} parent=1 // pred_fallthru
      _
    // Predicated region
    $region30: #{tpu_custom_call.1} parent=1 // pred_check
      _
    $region31: #{tpu_custom_call.1} parent=1 // pred_check_branch
      %84 = sbr.rel (0) target = $region33
    $region32: #{tpu_custom_call.1} parent=1 // pred_region
      %s86 = ssub.s32 2048, 2048
      %87 = vsyncadd [#allocation12], %s86
      %s88 = sshll.u32 [#allocation11], 4
      %s89 = int_to_ptr.vmem [resolvable:$true] %s88
      %94 = dma.hbm_to_vmem [thread:$0]  %s7, 2048, %s89, [#allocation12], 128, 128, 8
    $region33: #{tpu_custom_call.1} parent=1 // pred_fallthru
      _
    // Predicated region
    $region34: #{tpu_custom_call.1} parent=1 // pred_check
      _
    $region35: #{tpu_custom_call.1} parent=1 // pred_check_branch
      %96 = sbr.rel (0) target = $region37
    $region36: #{tpu_custom_call.1} parent=1 // pred_region
      _
    $region37: #{tpu_custom_call.1} parent=1 // pred_fallthru
      _
    // Predicated region
    $region38: #{tpu_custom_call.1} parent=1 // pred_check
      _
    $region39: #{tpu_custom_call.1} parent=1 // pred_check_branch
      %98 = sbr.rel (0) target = $region41
    $region40: #{tpu_custom_call.1} parent=1 // pred_region
      %99 = dma.done [#allocation3], 2048
    $region41: #{tpu_custom_call.1} parent=1 // pred_fallthru
      _
    // Predicated region
    $region42: #{tpu_custom_call.1} parent=1 // pred_check
      _
    $region43: #{tpu_custom_call.1} parent=1 // pred_check_branch
      %101 = sbr.rel (0) target = $region45
    $region44: #{tpu_custom_call.1} parent=1 // pred_region
      %102 = dma.done [#allocation6], 2048
    $region45: #{tpu_custom_call.1} parent=1 // pred_fallthru
      _
    // Predicated region
    $region46: #{tpu_custom_call.1} parent=1 // pred_check
      _
    $region47: #{tpu_custom_call.1} parent=1 // pred_check_branch
      %104 = sbr.rel (0) target = $region49
    $region48: #{tpu_custom_call.1} parent=1 // pred_region
      %105 = dma.done [#allocation6], 2048
    $region49: #{tpu_custom_call.1} parent=1 // pred_fallthru
      _
    // Predicated region
    $region50: #{tpu_custom_call.1} parent=1 // pred_check
      _
    $region51: #{tpu_custom_call.1} parent=1 // pred_check_branch
      %107 = sbr.rel (0) target = $region53
    $region52: #{tpu_custom_call.1} parent=1 // pred_region
      %108 = dma.done [#allocation9], 2048
    $region53: #{tpu_custom_call.1} parent=1 // pred_fallthru
      _
    // Predicated region
    $region54: #{tpu_custom_call.1} parent=1 // pred_check
      _
    $region55: #{tpu_custom_call.1} parent=1 // pred_check_branch
      %110 = sbr.rel (0) target = $region57
    $region56: #{tpu_custom_call.1} parent=1 // pred_region
      %111 = dma.done [#allocation9], 2048
    $region57: #{tpu_custom_call.1} parent=1 // pred_fallthru
      _
    // Predicated region
    $region58: #{tpu_custom_call.1} parent=1 // pred_check
      _
    $region59: #{tpu_custom_call.1} parent=1 // pred_check_branch
      %113 = sbr.rel (0) target = $region61
    $region60: #{tpu_custom_call.1} parent=1 // pred_region
      %114 = dma.done [#allocation12], 2048
    $region61: #{tpu_custom_call.1} parent=1 // pred_fallthru
      _
    %v115 = vlaneseq
    %v116 = vand.u32 %v115, 127
    %vm117 = vcmp.lt.s32.totalorder %v116, 16
    %v118 = vsel %vm117, 0.0, -1e+30
    %v119 = vld [vmem:[#allocation2] sm:$0xff]
    %v120 = vld [vmem:[#allocation2 + $0x8] sm:$0xff]
    %v121 = vld [vmem:[#allocation2 + $0x10] sm:$0xff]
    %v122 = vld [vmem:[#allocation2 + $0x18] sm:$0xff]
    %v123 = vld [vmem:[#allocation2 + $0x20] sm:$0xff]
    %v124 = vld [vmem:[#allocation2 + $0x28] sm:$0xff]
    %v125 = vld [vmem:[#allocation2 + $0x30] sm:$0xff]
    %v126 = vld [vmem:[#allocation2 + $0x38] sm:$0xff]
    %v127 = vld [vmem:[#allocation2 + $0x40] sm:$0xff]
    %v128 = vld [vmem:[#allocation2 + $0x48] sm:$0xff]
    %v129 = vld [vmem:[#allocation2 + $0x50] sm:$0xff]
    %v130 = vld [vmem:[#allocation2 + $0x58] sm:$0xff]
    %v131 = vld [vmem:[#allocation2 + $0x60] sm:$0xff]
    %v132 = vld [vmem:[#allocation2 + $0x68] sm:$0xff]
    %v133 = vld [vmem:[#allocation2 + $0x70] sm:$0xff]
    %v134 = vld [vmem:[#allocation2 + $0x78] sm:$0xff]
    %v135 = vld [vmem:[#allocation5] sm:$0xff]
    %v136 = vld [vmem:[#allocation5 + $0x8] sm:$0xff]
    %v137 = vld [vmem:[#allocation5 + $0x10] sm:$0xff]
    %v138 = vld [vmem:[#allocation5 + $0x18] sm:$0xff]
    %v139 = vld [vmem:[#allocation5 + $0x20] sm:$0xff]
    %v140 = vld [vmem:[#allocation5 + $0x28] sm:$0xff]
    %v141 = vld [vmem:[#allocation5 + $0x30] sm:$0xff]
    %v142 = vld [vmem:[#allocation5 + $0x38] sm:$0xff]
    %v143 = vld [vmem:[#allocation5 + $0x40] sm:$0xff]
    %v144 = vld [vmem:[#allocation5 + $0x48] sm:$0xff]
    %v145 = vld [vmem:[#allocation5 + $0x50] sm:$0xff]
    %v146 = vld [vmem:[#allocation5 + $0x58] sm:$0xff]
    %v147 = vld [vmem:[#allocation5 + $0x60] sm:$0xff]
    %v148 = vld [vmem:[#allocation5 + $0x68] sm:$0xff]
    %v149 = vld [vmem:[#allocation5 + $0x70] sm:$0xff]
    %v150 = vld [vmem:[#allocation5 + $0x78] sm:$0xff]
    %v151 = vld [vmem:[%s2] sm:$0x1]
    %v152 = vld [vmem:[#allocation7] sm:$0xff]
    %v153 = vld [vmem:[#allocation7 + $0x8] sm:$0xff]
    %v154 = vld [vmem:[#allocation7 + $0x10] sm:$0xff]
    %v155 = vld [vmem:[#allocation7 + $0x18] sm:$0xff]
    %v156 = vld [vmem:[#allocation7 + $0x20] sm:$0xff]
    %v157 = vld [vmem:[#allocation7 + $0x28] sm:$0xff]
    %v158 = vld [vmem:[#allocation7 + $0x30] sm:$0xff]
    %v159 = vld [vmem:[#allocation7 + $0x38] sm:$0xff]
    %v160 = vld [vmem:[#allocation7 + $0x40] sm:$0xff]
    %v161 = vld [vmem:[#allocation7 + $0x48] sm:$0xff]
    %v162 = vld [vmem:[#allocation7 + $0x50] sm:$0xff]
    %v163 = vld [vmem:[#allocation7 + $0x58] sm:$0xff]
    %v164 = vld [vmem:[#allocation7 + $0x60] sm:$0xff]
    %v165 = vld [vmem:[#allocation7 + $0x68] sm:$0xff]
    %v166 = vld [vmem:[#allocation7 + $0x70] sm:$0xff]
    %v167 = vld [vmem:[#allocation7 + $0x78] sm:$0xff]
    %v169 = vlaneseq
    %v170 = vshrl.u32 %v169, 7
    %v171 = vsub.s32 0, %v170
    %v172 = vrot.slane %v151, %v171
    %174 = vmatprep.subr.mxu0 0.0
    %175 = vmatpush1.msra.mxu0 %v135
    %176 = vmatprep.subr.mxu0 0.0
    %177 = vmatpush1.msra.mxu0 %v136
    %178 = vmatprep.subr.mxu0 0.0
    %179 = vmatpush1.msra.mxu0 %v137
    %180 = vmatprep.subr.mxu0 0.0
    %181 = vmatpush1.msra.mxu0 %v138
    %182 = vmatprep.subr.mxu0 0.0
    %183 = vmatpush1.msra.mxu0 %v139
    %184 = vmatprep.subr.mxu0 0.0
    %185 = vmatpush1.msra.mxu0 %v140
    %186 = vmatprep.subr.mxu0 0.0
    %187 = vmatpush1.msra.mxu0 %v141
    %188 = vmatprep.subr.mxu0 0.0
    %189 = vmatpush1.msra.mxu0 %v142
    %190 = vmatprep.subr.mxu0 0.0
    %191 = vmatpush1.msra.mxu0 %v143
    %192 = vmatprep.subr.mxu0 0.0
    %193 = vmatpush1.msra.mxu0 %v144
    %194 = vmatprep.subr.mxu0 0.0
    %195 = vmatpush1.msra.mxu0 %v145
    %196 = vmatprep.subr.mxu0 0.0
    %197 = vmatpush1.msra.mxu0 %v146
    %198 = vmatprep.subr.mxu0 0.0
    %199 = vmatpush1.msra.mxu0 %v147
    %200 = vmatprep.subr.mxu0 0.0
    %201 = vmatpush1.msra.mxu0 %v148
    %202 = vmatprep.subr.mxu0 0.0
    %203 = vmatpush1.msra.mxu0 %v149
    %204 = vmatprep.subr.mxu0 0.0
    %205 = vmatpush1.msra.mxu0 %v150
    %206 = vmatprep.subr.mxu0 0.0
    %207 = vmatpush1.msra.mxu0 0.0
    %208 = vmatprep.subr.mxu0 0.0
    %209 = vmatpush1.msra.mxu0 0.0
    %210 = vmatprep.subr.mxu0 0.0
    %211 = vmatpush1.msra.mxu0 0.0
    %212 = vmatprep.subr.mxu0 0.0
    %213 = vmatpush1.msra.mxu0 0.0
    %214 = vmatprep.subr.mxu0 0.0
    %215 = vmatpush1.msra.mxu0 0.0
    %216 = vmatprep.subr.mxu0 0.0
    %217 = vmatpush1.msra.mxu0 0.0
    %218 = vmatprep.subr.mxu0 0.0
    %219 = vmatpush1.msra.mxu0 0.0
    %220 = vmatprep.subr.mxu0 0.0
    %221 = vmatpush1.msra.mxu0 0.0
    %222 = vmatprep.subr.mxu0 0.0
    %223 = vmatpush1.msra.mxu0 0.0
    %224 = vmatprep.subr.mxu0 0.0
    %225 = vmatpush1.msra.mxu0 0.0
    %226 = vmatprep.subr.mxu0 0.0
    %227 = vmatpush1.msra.mxu0 0.0
    %228 = vmatprep.subr.mxu0 0.0
    %229 = vmatpush1.msra.mxu0 0.0
    %230 = vmatprep.subr.mxu0 0.0
    %231 = vmatpush1.msra.mxu0 0.0
    %232 = vmatprep.subr.mxu0 0.0
    %233 = vmatpush1.msra.mxu0 0.0
    %234 = vmatprep.subr.mxu0 0.0
    %235 = vmatpush1.msra.mxu0 0.0
    %236 = vmatprep.subr.mxu0 0.0
    %237 = vmatpush1.msra.mxu0 0.0
    %238 = vmatprep.mubr.f32.mxu0 0.0
    %239 = vmatmul.mubr.f32.gmra.mrb[0].mxu0 %v119
    %v240 = vpop.f32.mrb[0].mxu0
    %v241 = vadd.f32 %v172, %v240
    %v242 = vpop.f32.mrb[0].mxu0
    %243 = vmatprep.mubr.f32.mxu0 0.0
    %244 = vmatmul.mubr.f32.gmra.mrb[0].mxu0 %v120
    %v245 = vpop.f32.mrb[0].mxu0
    %v246 = vadd.f32 %v172, %v245
    %v247 = vpop.f32.mrb[0].mxu0
    %248 = vmatprep.mubr.f32.mxu0 0.0
    %249 = vmatmul.mubr.f32.gmra.mrb[0].mxu0 %v121
    %v250 = vpop.f32.mrb[0].mxu0
    %v251 = vadd.f32 %v172, %v250
    %v252 = vpop.f32.mrb[0].mxu0
    %253 = vmatprep.mubr.f32.mxu0 0.0
    %254 = vmatmul.mubr.f32.gmra.mrb[0].mxu0 %v122
    %v255 = vpop.f32.mrb[0].mxu0
    %v256 = vadd.f32 %v172, %v255
    %v257 = vpop.f32.mrb[0].mxu0
    %258 = vmatprep.mubr.f32.mxu0 0.0
    %259 = vmatmul.mubr.f32.gmra.mrb[0].mxu0 %v123
    %v260 = vpop.f32.mrb[0].mxu0
    %v261 = vadd.f32 %v172, %v260
    %v262 = vpop.f32.mrb[0].mxu0
    %263 = vmatprep.mubr.f32.mxu0 0.0
    %264 = vmatmul.mubr.f32.gmra.mrb[0].mxu0 %v124
    %v265 = vpop.f32.mrb[0].mxu0
    %v266 = vadd.f32 %v172, %v265
    %v267 = vpop.f32.mrb[0].mxu0
    %268 = vmatprep.mubr.f32.mxu0 0.0
    %269 = vmatmul.mubr.f32.gmra.mrb[0].mxu0 %v125
    %v270 = vpop.f32.mrb[0].mxu0
    %v271 = vadd.f32 %v172, %v270
    %v272 = vpop.f32.mrb[0].mxu0
    %273 = vmatprep.mubr.f32.mxu0 0.0
    %274 = vmatmul.mubr.f32.gmra.mrb[0].mxu0 %v126
    %v275 = vpop.f32.mrb[0].mxu0
    %v276 = vadd.f32 %v172, %v275
    %v277 = vpop.f32.mrb[0].mxu0
    %278 = vmatprep.mubr.f32.mxu0 0.0
    %279 = vmatmul.mubr.f32.gmra.mrb[0].mxu0 %v127
    %v280 = vpop.f32.mrb[0].mxu0
    %v281 = vadd.f32 %v172, %v280
    %v282 = vpop.f32.mrb[0].mxu0
    %283 = vmatprep.mubr.f32.mxu0 0.0
    %284 = vmatmul.mubr.f32.gmra.mrb[0].mxu0 %v128
    %v285 = vpop.f32.mrb[0].mxu0
    %v286 = vadd.f32 %v172, %v285
    %v287 = vpop.f32.mrb[0].mxu0
    %288 = vmatprep.mubr.f32.mxu0 0.0
    %289 = vmatmul.mubr.f32.gmra.mrb[0].mxu0 %v129
    %v290 = vpop.f32.mrb[0].mxu0
    %v291 = vadd.f32 %v172, %v290
    %v292 = vpop.f32.mrb[0].mxu0
    %293 = vmatprep.mubr.f32.mxu0 0.0
    %294 = vmatmul.mubr.f32.gmra.mrb[0].mxu0 %v130
    %v295 = vpop.f32.mrb[0].mxu0
    %v296 = vadd.f32 %v172, %v295
    %v297 = vpop.f32.mrb[0].mxu0
    %298 = vmatprep.mubr.f32.mxu0 0.0
    %299 = vmatmul.mubr.f32.gmra.mrb[0].mxu0 %v131
    %v300 = vpop.f32.mrb[0].mxu0
    %v301 = vadd.f32 %v172, %v300
    %v302 = vpop.f32.mrb[0].mxu0
    %303 = vmatprep.mubr.f32.mxu0 0.0
    %304 = vmatmul.mubr.f32.gmra.mrb[0].mxu0 %v132
    %v305 = vpop.f32.mrb[0].mxu0
    %v306 = vadd.f32 %v172, %v305
    %v307 = vpop.f32.mrb[0].mxu0
    %308 = vmatprep.mubr.f32.mxu0 0.0
    %309 = vmatmul.mubr.f32.gmra.mrb[0].mxu0 %v133
    %v310 = vpop.f32.mrb[0].mxu0
    %v311 = vadd.f32 %v172, %v310
    %v312 = vpop.f32.mrb[0].mxu0
    %313 = vmatprep.mubr.f32.mxu0 0.0
    %314 = vmatmul.mubr.f32.gmra.mrb[0].mxu0 %v134
    %v315 = vpop.f32.mrb[0].mxu0
    %v316 = vadd.f32 %v172, %v315
    %v317 = vpop.f32.mrb[0].mxu0
    %318 = vdwg.mxu0
    %319 = vmatprep.subr.mxu0 0.0
    %320 = vmatpush1.msra.mxu0 %v152
    %321 = vmatprep.subr.mxu0 0.0
    %322 = vmatpush1.msra.mxu0 %v153
    %323 = vmatprep.subr.mxu0 0.0
    %324 = vmatpush1.msra.mxu0 %v154
    %325 = vmatprep.subr.mxu0 0.0
    %326 = vmatpush1.msra.mxu0 %v155
    %327 = vmatprep.subr.mxu0 0.0
    %328 = vmatpush1.msra.mxu0 %v156
    %329 = vmatprep.subr.mxu0 0.0
    %330 = vmatpush1.msra.mxu0 %v157
    %331 = vmatprep.subr.mxu0 0.0
    %332 = vmatpush1.msra.mxu0 %v158
    %333 = vmatprep.subr.mxu0 0.0
    %334 = vmatpush1.msra.mxu0 %v159
    %335 = vmatprep.subr.mxu0 0.0
    %336 = vmatpush1.msra.mxu0 %v160
    %337 = vmatprep.subr.mxu0 0.0
    %338 = vmatpush1.msra.mxu0 %v161
    %339 = vmatprep.subr.mxu0 0.0
    %340 = vmatpush1.msra.mxu0 %v162
    %341 = vmatprep.subr.mxu0 0.0
    %342 = vmatpush1.msra.mxu0 %v163
    %343 = vmatprep.subr.mxu0 0.0
    %344 = vmatpush1.msra.mxu0 %v164
    %345 = vmatprep.subr.mxu0 0.0
    %346 = vmatpush1.msra.mxu0 %v165
    %347 = vmatprep.subr.mxu0 0.0
    %348 = vmatpush1.msra.mxu0 %v166
    %349 = vmatprep.subr.mxu0 0.0
    %350 = vmatpush1.msra.mxu0 %v167
    %351 = vmatprep.subr.mxu0 0.0
    %352 = vmatpush1.msra.mxu0 0.0
    %353 = vmatprep.subr.mxu0 0.0
    %354 = vmatpush1.msra.mxu0 0.0
    %355 = vmatprep.subr.mxu0 0.0
    %356 = vmatpush1.msra.mxu0 0.0
    %357 = vmatprep.subr.mxu0 0.0
    %358 = vmatpush1.msra.mxu0 0.0
    %359 = vmatprep.subr.mxu0 0.0
    %360 = vmatpush1.msra.mxu0 0.0
    %361 = vmatprep.subr.mxu0 0.0
    %362 = vmatpush1.msra.mxu0 0.0
    %363 = vmatprep.subr.mxu0 0.0
    %364 = vmatpush1.msra.mxu0 0.0
    %365 = vmatprep.subr.mxu0 0.0
    %366 = vmatpush1.msra.mxu0 0.0
    %367 = vmatprep.subr.mxu0 0.0
    %368 = vmatpush1.msra.mxu0 0.0
    %369 = vmatprep.subr.mxu0 0.0
    %370 = vmatpush1.msra.mxu0 0.0
    %371 = vmatprep.subr.mxu0 0.0
    %372 = vmatpush1.msra.mxu0 0.0
    %373 = vmatprep.subr.mxu0 0.0
    %374 = vmatpush1.msra.mxu0 0.0
    %375 = vmatprep.subr.mxu0 0.0
    %376 = vmatpush1.msra.mxu0 0.0
    %377 = vmatprep.subr.mxu0 0.0
    %378 = vmatpush1.msra.mxu0 0.0
    %379 = vmatprep.subr.mxu0 0.0
    %380 = vmatpush1.msra.mxu0 0.0
    %381 = vmatprep.subr.mxu0 0.0
    %382 = vmatpush1.msra.mxu0 0.0
    %383 = vmatprep.mubr.f32.mxu0 0.0
    %384 = vmatmul.mubr.f32.gmra.mrb[0].mxu0 %v241
    %v385 = vpop.f32.mrb[0].mxu0
    %v386 = vadd.f32 0.0, %v385
    %v387 = vpop.f32.mrb[0].mxu0
    %388 = vmatprep.mubr.f32.mxu0 0.0
    %389 = vmatmul.mubr.f32.gmra.mrb[0].mxu0 %v246
    %v390 = vpop.f32.mrb[0].mxu0
    %v391 = vadd.f32 0.0, %v390
    %v392 = vpop.f32.mrb[0].mxu0
    %393 = vmatprep.mubr.f32.mxu0 0.0
    %394 = vmatmul.mubr.f32.gmra.mrb[0].mxu0 %v251
    %v395 = vpop.f32.mrb[0].mxu0
    %v396 = vadd.f32 0.0, %v395
    %v397 = vpop.f32.mrb[0].mxu0
    %398 = vmatprep.mubr.f32.mxu0 0.0
    %399 = vmatmul.mubr.f32.gmra.mrb[0].mxu0 %v256
    %v400 = vpop.f32.mrb[0].mxu0
    %v401 = vadd.f32 0.0, %v400
    %v402 = vpop.f32.mrb[0].mxu0
    %403 = vmatprep.mubr.f32.mxu0 0.0
    %404 = vmatmul.mubr.f32.gmra.mrb[0].mxu0 %v261
    %v405 = vpop.f32.mrb[0].mxu0
    %v406 = vadd.f32 0.0, %v405
    %v407 = vpop.f32.mrb[0].mxu0
    %408 = vmatprep.mubr.f32.mxu0 0.0
    %409 = vmatmul.mubr.f32.gmra.mrb[0].mxu0 %v266
    %v410 = vpop.f32.mrb[0].mxu0
    %v411 = vadd.f32 0.0, %v410
    %v412 = vpop.f32.mrb[0].mxu0
    %413 = vmatprep.mubr.f32.mxu0 0.0
    %414 = vmatmul.mubr.f32.gmra.mrb[0].mxu0 %v271
    %v415 = vpop.f32.mrb[0].mxu0
    %v416 = vadd.f32 0.0, %v415
    %v417 = vpop.f32.mrb[0].mxu0
    %418 = vmatprep.mubr.f32.mxu0 0.0
    %419 = vmatmul.mubr.f32.gmra.mrb[0].mxu0 %v276
    %v420 = vpop.f32.mrb[0].mxu0
    %v421 = vadd.f32 0.0, %v420
    %v422 = vpop.f32.mrb[0].mxu0
    %423 = vmatprep.mubr.f32.mxu0 0.0
    %424 = vmatmul.mubr.f32.gmra.mrb[0].mxu0 %v281
    %v425 = vpop.f32.mrb[0].mxu0
    %v426 = vadd.f32 0.0, %v425
    %v427 = vpop.f32.mrb[0].mxu0
    %428 = vmatprep.mubr.f32.mxu0 0.0
    %429 = vmatmul.mubr.f32.gmra.mrb[0].mxu0 %v286
    %v430 = vpop.f32.mrb[0].mxu0
    %v431 = vadd.f32 0.0, %v430
    %v432 = vpop.f32.mrb[0].mxu0
    %433 = vmatprep.mubr.f32.mxu0 0.0
    %434 = vmatmul.mubr.f32.gmra.mrb[0].mxu0 %v291
    %v435 = vpop.f32.mrb[0].mxu0
    %v436 = vadd.f32 0.0, %v435
    %v437 = vpop.f32.mrb[0].mxu0
    %438 = vmatprep.mubr.f32.mxu0 0.0
    %439 = vmatmul.mubr.f32.gmra.mrb[0].mxu0 %v296
    %v440 = vpop.f32.mrb[0].mxu0
    %v441 = vadd.f32 0.0, %v440
    %v442 = vpop.f32.mrb[0].mxu0
    %443 = vmatprep.mubr.f32.mxu0 0.0
    %444 = vmatmul.mubr.f32.gmra.mrb[0].mxu0 %v301
    %v445 = vpop.f32.mrb[0].mxu0
    %v446 = vadd.f32 0.0, %v445
    %v447 = vpop.f32.mrb[0].mxu0
    %448 = vmatprep.mubr.f32.mxu0 0.0
    %449 = vmatmul.mubr.f32.gmra.mrb[0].mxu0 %v306
    %v450 = vpop.f32.mrb[0].mxu0
    %v451 = vadd.f32 0.0, %v450
    %v452 = vpop.f32.mrb[0].mxu0
    %453 = vmatprep.mubr.f32.mxu0 0.0
    %454 = vmatmul.mubr.f32.gmra.mrb[0].mxu0 %v311
    %v455 = vpop.f32.mrb[0].mxu0
    %v456 = vadd.f32 0.0, %v455
    %v457 = vpop.f32.mrb[0].mxu0
    %458 = vmatprep.mubr.f32.mxu0 0.0
    %459 = vmatmul.mubr.f32.gmra.mrb[0].mxu0 %v316
    %v460 = vpop.f32.mrb[0].mxu0
    %v461 = vadd.f32 0.0, %v460
    %v462 = vpop.f32.mrb[0].mxu0
    %463 = vdwg.mxu0
    %464 = vmatprep.subr.mxu0 0.0
    %465 = vmatpush1.xpose.msra.mxu0 %v241
    %466 = vmatprep.subr.mxu0 0.0
    %467 = vmatpush1.xpose.msra.mxu0 %v246
    %468 = vmatprep.subr.mxu0 0.0
    %469 = vmatpush1.xpose.msra.mxu0 %v251
    %470 = vmatprep.subr.mxu0 0.0
    %471 = vmatpush1.xpose.msra.mxu0 %v256
    %472 = vmatprep.subr.mxu0 0.0
    %473 = vmatpush1.xpose.msra.mxu0 %v261
    %474 = vmatprep.subr.mxu0 0.0
    %475 = vmatpush1.xpose.msra.mxu0 %v266
    %476 = vmatprep.subr.mxu0 0.0
    %477 = vmatpush1.xpose.msra.mxu0 %v271
    %478 = vmatprep.subr.mxu0 0.0
    %479 = vmatpush1.xpose.msra.mxu0 %v276
    %480 = vmatprep.subr.mxu0 0.0
    %481 = vmatpush1.xpose.msra.mxu0 %v281
    %482 = vmatprep.subr.mxu0 0.0
    %483 = vmatpush1.xpose.msra.mxu0 %v286
    %484 = vmatprep.subr.mxu0 0.0
    %485 = vmatpush1.xpose.msra.mxu0 %v291
    %486 = vmatprep.subr.mxu0 0.0
    %487 = vmatpush1.xpose.msra.mxu0 %v296
    %488 = vmatprep.subr.mxu0 0.0
    %489 = vmatpush1.xpose.msra.mxu0 %v301
    %490 = vmatprep.subr.mxu0 0.0
    %491 = vmatpush1.xpose.msra.mxu0 %v306
    %492 = vmatprep.subr.mxu0 0.0
    %493 = vmatpush1.xpose.msra.mxu0 %v311
    %494 = vmatprep.subr.mxu0 0.0
    %495 = vmatpush1.xpose.msra.mxu0 %v316
    %496 = vmatprep.subr.mxu0 0.0
    %497 = vmatpush1.xpose.msra.mxu0 0.0
    %498 = vmatprep.subr.mxu0 0.0
    %499 = vmatpush1.xpose.msra.mxu0 0.0
    %500 = vmatprep.subr.mxu0 0.0
    %501 = vmatpush1.xpose.msra.mxu0 0.0
    %502 = vmatprep.subr.mxu0 0.0
    %503 = vmatpush1.xpose.msra.mxu0 0.0
    %504 = vmatprep.subr.mxu0 0.0
    %505 = vmatpush1.xpose.msra.mxu0 0.0
    %506 = vmatprep.subr.mxu0 0.0
    %507 = vmatpush1.xpose.msra.mxu0 0.0
    %508 = vmatprep.subr.mxu0 0.0
    %509 = vmatpush1.xpose.msra.mxu0 0.0
    %510 = vmatprep.subr.mxu0 0.0
    %511 = vmatpush1.xpose.msra.mxu0 0.0
    %512 = vmatprep.subr.mxu0 0.0
    %513 = vmatpush1.xpose.msra.mxu0 0.0
    %514 = vmatprep.subr.mxu0 0.0
    %515 = vmatpush1.xpose.msra.mxu0 0.0
    %516 = vmatprep.subr.mxu0 0.0
    %517 = vmatpush1.xpose.msra.mxu0 0.0
    %518 = vmatprep.subr.mxu0 0.0
    %519 = vmatpush1.xpose.msra.mxu0 0.0
    %520 = vmatprep.subr.mxu0 0.0
    %521 = vmatpush1.xpose.msra.mxu0 0.0
    %522 = vmatprep.subr.mxu0 0.0
    %523 = vmatpush1.xpose.msra.mxu0 0.0
    %524 = vmatprep.subr.mxu0 0.0
    %525 = vmatpush1.xpose.msra.mxu0 0.0
    %526 = vmatprep.subr.mxu0 0.0
    %527 = vmatpush1.xpose.msra.mxu0 0.0
    %528 = vmatprep.mubr.f32.mxu0 0.0
    %529 = vmatmul.mubr.f32.gmra.mrb[0].mxu0 %v386
    %v530 = vpop.f32.mrb[0].mxu0
    %v531 = vadd.f32 %v118, %v530
    %v532 = vpop.f32.mrb[0].mxu0
    %533 = vmatprep.mubr.f32.mxu0 0.0
    %534 = vmatmul.mubr.f32.gmra.mrb[0].mxu0 %v391
    %v535 = vpop.f32.mrb[0].mxu0
    %v536 = vadd.f32 %v118, %v535
    %v537 = vpop.f32.mrb[0].mxu0
    %538 = vmatprep.mubr.f32.mxu0 0.0
    %539 = vmatmul.mubr.f32.gmra.mrb[0].mxu0 %v396
    %v540 = vpop.f32.mrb[0].mxu0
    %v541 = vadd.f32 %v118, %v540
    %v542 = vpop.f32.mrb[0].mxu0
    %543 = vmatprep.mubr.f32.mxu0 0.0
    %544 = vmatmul.mubr.f32.gmra.mrb[0].mxu0 %v401
    %v545 = vpop.f32.mrb[0].mxu0
    %v546 = vadd.f32 %v118, %v545
    %v547 = vpop.f32.mrb[0].mxu0
    %548 = vmatprep.mubr.f32.mxu0 0.0
    %549 = vmatmul.mubr.f32.gmra.mrb[0].mxu0 %v406
    %v550 = vpop.f32.mrb[0].mxu0
    %v551 = vadd.f32 %v118, %v550
    %v552 = vpop.f32.mrb[0].mxu0
    %553 = vmatprep.mubr.f32.mxu0 0.0
    %554 = vmatmul.mubr.f32.gmra.mrb[0].mxu0 %v411
    %v555 = vpop.f32.mrb[0].mxu0
    %v556 = vadd.f32 %v118, %v555
    %v557 = vpop.f32.mrb[0].mxu0
    %558 = vmatprep.mubr.f32.mxu0 0.0
    %559 = vmatmul.mubr.f32.gmra.mrb[0].mxu0 %v416
    %v560 = vpop.f32.mrb[0].mxu0
    %v561 = vadd.f32 %v118, %v560
    %v562 = vpop.f32.mrb[0].mxu0
    %563 = vmatprep.mubr.f32.mxu0 0.0
    %564 = vmatmul.mubr.f32.gmra.mrb[0].mxu0 %v421
    %v565 = vpop.f32.mrb[0].mxu0
    %v566 = vadd.f32 %v118, %v565
    %v567 = vpop.f32.mrb[0].mxu0
    %568 = vmatprep.mubr.f32.mxu0 0.0
    %569 = vmatmul.mubr.f32.gmra.mrb[0].mxu0 %v426
    %v570 = vpop.f32.mrb[0].mxu0
    %v571 = vadd.f32 %v118, %v570
    %v572 = vpop.f32.mrb[0].mxu0
    %573 = vmatprep.mubr.f32.mxu0 0.0
    %574 = vmatmul.mubr.f32.gmra.mrb[0].mxu0 %v431
    %v575 = vpop.f32.mrb[0].mxu0
    %v576 = vadd.f32 %v118, %v575
    %v577 = vpop.f32.mrb[0].mxu0
    %578 = vmatprep.mubr.f32.mxu0 0.0
    %579 = vmatmul.mubr.f32.gmra.mrb[0].mxu0 %v436
    %v580 = vpop.f32.mrb[0].mxu0
    %v581 = vadd.f32 %v118, %v580
    %v582 = vpop.f32.mrb[0].mxu0
    %583 = vmatprep.mubr.f32.mxu0 0.0
    %584 = vmatmul.mubr.f32.gmra.mrb[0].mxu0 %v441
    %v585 = vpop.f32.mrb[0].mxu0
    %v586 = vadd.f32 %v118, %v585
    %v587 = vpop.f32.mrb[0].mxu0
    %588 = vmatprep.mubr.f32.mxu0 0.0
    %589 = vmatmul.mubr.f32.gmra.mrb[0].mxu0 %v446
    %v590 = vpop.f32.mrb[0].mxu0
    %v591 = vadd.f32 %v118, %v590
    %v592 = vpop.f32.mrb[0].mxu0
    %593 = vmatprep.mubr.f32.mxu0 0.0
    %594 = vmatmul.mubr.f32.gmra.mrb[0].mxu0 %v451
    %v595 = vpop.f32.mrb[0].mxu0
    %v596 = vadd.f32 %v118, %v595
    %v597 = vpop.f32.mrb[0].mxu0
    %598 = vmatprep.mubr.f32.mxu0 0.0
    %599 = vmatmul.mubr.f32.gmra.mrb[0].mxu0 %v456
    %v600 = vpop.f32.mrb[0].mxu0
    %v601 = vadd.f32 %v118, %v600
    %v602 = vpop.f32.mrb[0].mxu0
    %603 = vmatprep.mubr.f32.mxu0 0.0
    %604 = vmatmul.mubr.f32.gmra.mrb[0].mxu0 %v461
    %v605 = vpop.f32.mrb[0].mxu0
    %v606 = vadd.f32 %v118, %v605
    %v607 = vpop.f32.mrb[0].mxu0
    %608 = vdwg.mxu0
    %609 = vmax.xlane.f32.xlu0 %v531
    %v610 = vpop.xlane.xlu0 %609
    %611 = vmax.xlane.f32.xlu0 %v536
    %v612 = vpop.xlane.xlu0 %611
    %613 = vmax.xlane.f32.xlu0 %v541
    %v614 = vpop.xlane.xlu0 %613
    %615 = vmax.xlane.f32.xlu0 %v546
    %v616 = vpop.xlane.xlu0 %615
    %617 = vmax.xlane.f32.xlu0 %v551
    %v618 = vpop.xlane.xlu0 %617
    %619 = vmax.xlane.f32.xlu0 %v556
    %v620 = vpop.xlane.xlu0 %619
    %621 = vmax.xlane.f32.xlu0 %v561
    %v622 = vpop.xlane.xlu0 %621
    %623 = vmax.xlane.f32.xlu0 %v566
    %v624 = vpop.xlane.xlu0 %623
    %625 = vmax.xlane.f32.xlu0 %v571
    %v626 = vpop.xlane.xlu0 %625
    %627 = vmax.xlane.f32.xlu0 %v576
    %v628 = vpop.xlane.xlu0 %627
    %629 = vmax.xlane.f32.xlu0 %v581
    %v630 = vpop.xlane.xlu0 %629
    %631 = vmax.xlane.f32.xlu0 %v586
    %v632 = vpop.xlane.xlu0 %631
    %633 = vmax.xlane.f32.xlu0 %v591
    %v634 = vpop.xlane.xlu0 %633
    %635 = vmax.xlane.f32.xlu0 %v596
    %v636 = vpop.xlane.xlu0 %635
    %637 = vmax.xlane.f32.xlu0 %v601
    %v638 = vpop.xlane.xlu0 %637
    %639 = vmax.xlane.f32.xlu0 %v606
    %v640 = vpop.xlane.xlu0 %639
    %v641 = vsub.f32 %v531, %v610
    %v642 = vsub.f32 %v536, %v612
    %v643 = vsub.f32 %v541, %v614
    %v644 = vsub.f32 %v546, %v616
    %v645 = vsub.f32 %v551, %v618
    %v646 = vsub.f32 %v556, %v620
    %v647 = vsub.f32 %v561, %v622
    %v648 = vsub.f32 %v566, %v624
    %v649 = vsub.f32 %v571, %v626
    %v650 = vsub.f32 %v576, %v628
    %v651 = vsub.f32 %v581, %v630
    %v652 = vsub.f32 %v586, %v632
    %v653 = vsub.f32 %v591, %v634
    %v654 = vsub.f32 %v596, %v636
    %v655 = vsub.f32 %v601, %v638
    %v656 = vsub.f32 %v606, %v640
    %v657 = vmul.f32 %v641, 1.442695
    %v658 = vpow.pop %v657
    %v659 = vmul.f32 %v642, 1.442695
    %v660 = vpow.pop %v659
    %v661 = vmul.f32 %v643, 1.442695
    %v662 = vpow.pop %v661
    %v663 = vmul.f32 %v644, 1.442695
    %v664 = vpow.pop %v663
    %v665 = vmul.f32 %v645, 1.442695
    %v666 = vpow.pop %v665
    %v667 = vmul.f32 %v646, 1.442695
    %v668 = vpow.pop %v667
    %v669 = vmul.f32 %v647, 1.442695
    %v670 = vpow.pop %v669
    %v671 = vmul.f32 %v648, 1.442695
    %v672 = vpow.pop %v671
    %v673 = vmul.f32 %v649, 1.442695
    %v674 = vpow.pop %v673
    %v675 = vmul.f32 %v650, 1.442695
    %v676 = vpow.pop %v675
    %v677 = vmul.f32 %v651, 1.442695
    %v678 = vpow.pop %v677
    %v679 = vmul.f32 %v652, 1.442695
    %v680 = vpow.pop %v679
    %v681 = vmul.f32 %v653, 1.442695
    %v682 = vpow.pop %v681
    %v683 = vmul.f32 %v654, 1.442695
    %v684 = vpow.pop %v683
    %v685 = vmul.f32 %v655, 1.442695
    %v686 = vpow.pop %v685
    %v687 = vmul.f32 %v656, 1.442695
    %v688 = vpow.pop %v687
    %689 = vadd.xlane.f32.xlu0 %v658
    %v690 = vpop.xlane.xlu0 %689
    %691 = vadd.xlane.f32.xlu0 %v660
    %v692 = vpop.xlane.xlu0 %691
    %693 = vadd.xlane.f32.xlu0 %v662
    %v694 = vpop.xlane.xlu0 %693
    %695 = vadd.xlane.f32.xlu0 %v664
    %v696 = vpop.xlane.xlu0 %695
    %697 = vadd.xlane.f32.xlu0 %v666
    %v698 = vpop.xlane.xlu0 %697
    %699 = vadd.xlane.f32.xlu0 %v668
    %v700 = vpop.xlane.xlu0 %699
    %701 = vadd.xlane.f32.xlu0 %v670
    %v702 = vpop.xlane.xlu0 %701
    %703 = vadd.xlane.f32.xlu0 %v672
    %v704 = vpop.xlane.xlu0 %703
    %705 = vadd.xlane.f32.xlu0 %v674
    %v706 = vpop.xlane.xlu0 %705
    %707 = vadd.xlane.f32.xlu0 %v676
    %v708 = vpop.xlane.xlu0 %707
    %709 = vadd.xlane.f32.xlu0 %v678
    %v710 = vpop.xlane.xlu0 %709
    %711 = vadd.xlane.f32.xlu0 %v680
    %v712 = vpop.xlane.xlu0 %711
    %713 = vadd.xlane.f32.xlu0 %v682
    %v714 = vpop.xlane.xlu0 %713
    %715 = vadd.xlane.f32.xlu0 %v684
    %v716 = vpop.xlane.xlu0 %715
    %717 = vadd.xlane.f32.xlu0 %v686
    %v718 = vpop.xlane.xlu0 %717
    %719 = vadd.xlane.f32.xlu0 %v688
    %v720 = vpop.xlane.xlu0 %719
    %v721 = vrcp.pop %v690
    %v722 = vrcp.pop %v692
    %v723 = vrcp.pop %v694
    %v724 = vrcp.pop %v696
    %v725 = vrcp.pop %v698
    %v726 = vrcp.pop %v700
    %v727 = vrcp.pop %v702
    %v728 = vrcp.pop %v704
    %v729 = vrcp.pop %v706
    %v730 = vrcp.pop %v708
    %v731 = vrcp.pop %v710
    %v732 = vrcp.pop %v712
    %v733 = vrcp.pop %v714
    %v734 = vrcp.pop %v716
    %v735 = vrcp.pop %v718
    %v736 = vrcp.pop %v720
    %v737 = vmul.f32 %v690, %v721
    %v738 = vmul.f32 %v692, %v722
    %v739 = vmul.f32 %v694, %v723
    %v740 = vmul.f32 %v696, %v724
    %v741 = vmul.f32 %v698, %v725
    %v742 = vmul.f32 %v700, %v726
    %v743 = vmul.f32 %v702, %v727
    %v744 = vmul.f32 %v704, %v728
    %v745 = vmul.f32 %v706, %v729
    %v746 = vmul.f32 %v708, %v730
    %v747 = vmul.f32 %v710, %v731
    %v748 = vmul.f32 %v712, %v732
    %v749 = vmul.f32 %v714, %v733
    %v750 = vmul.f32 %v716, %v734
    %v751 = vmul.f32 %v718, %v735
    %v752 = vmul.f32 %v720, %v736
    %v753 = vsub.f32 2.0, %v737
    %v754 = vsub.f32 2.0, %v738
    %v755 = vsub.f32 2.0, %v739
    %v756 = vsub.f32 2.0, %v740
    %v757 = vsub.f32 2.0, %v741
    %v758 = vsub.f32 2.0, %v742
    %v759 = vsub.f32 2.0, %v743
    %v760 = vsub.f32 2.0, %v744
    %v761 = vsub.f32 2.0, %v745
    %v762 = vsub.f32 2.0, %v746
    %v763 = vsub.f32 2.0, %v747
    %v764 = vsub.f32 2.0, %v748
    %v765 = vsub.f32 2.0, %v749
    %v766 = vsub.f32 2.0, %v750
    %v767 = vsub.f32 2.0, %v751
    %v768 = vsub.f32 2.0, %v752
    %v769 = vmul.f32 %v721, %v753
    %v770 = vmul.f32 %v722, %v754
    %v771 = vmul.f32 %v723, %v755
    %v772 = vmul.f32 %v724, %v756
    %v773 = vmul.f32 %v725, %v757
    %v774 = vmul.f32 %v726, %v758
    %v775 = vmul.f32 %v727, %v759
    %v776 = vmul.f32 %v728, %v760
    %v777 = vmul.f32 %v729, %v761
    %v778 = vmul.f32 %v730, %v762
    %v779 = vmul.f32 %v731, %v763
    %v780 = vmul.f32 %v732, %v764
    %v781 = vmul.f32 %v733, %v765
    %v782 = vmul.f32 %v734, %v766
    %v783 = vmul.f32 %v735, %v767
    %v784 = vmul.f32 %v736, %v768
    %v785 = vmul.f32 %v658, %v769
    %v786 = vmul.f32 %v660, %v770
    %v787 = vmul.f32 %v662, %v771
    %v788 = vmul.f32 %v664, %v772
    %v789 = vmul.f32 %v666, %v773
    %v790 = vmul.f32 %v668, %v774
    %v791 = vmul.f32 %v670, %v775
    %v792 = vmul.f32 %v672, %v776
    %v793 = vmul.f32 %v674, %v777
    %v794 = vmul.f32 %v676, %v778
    %v795 = vmul.f32 %v678, %v779
    %v796 = vmul.f32 %v680, %v780
    %v797 = vmul.f32 %v682, %v781
    %v798 = vmul.f32 %v684, %v782
    %v799 = vmul.f32 %v686, %v783
    %v800 = vmul.f32 %v688, %v784
    %801 = vmatprep.subr.mxu0 0.0
    %802 = vmatpush1.msra.mxu0 %v241
    %803 = vmatprep.subr.mxu0 0.0
    %804 = vmatpush1.msra.mxu0 %v246
    %805 = vmatprep.subr.mxu0 0.0
    %806 = vmatpush1.msra.mxu0 %v251
    %807 = vmatprep.subr.mxu0 0.0
    %808 = vmatpush1.msra.mxu0 %v256
    %809 = vmatprep.subr.mxu0 0.0
    %810 = vmatpush1.msra.mxu0 %v261
    %811 = vmatprep.subr.mxu0 0.0
    %812 = vmatpush1.msra.mxu0 %v266
    %813 = vmatprep.subr.mxu0 0.0
    %814 = vmatpush1.msra.mxu0 %v271
    %815 = vmatprep.subr.mxu0 0.0
    %816 = vmatpush1.msra.mxu0 %v276
    %817 = vmatprep.subr.mxu0 0.0
    %818 = vmatpush1.msra.mxu0 %v281
    %819 = vmatprep.subr.mxu0 0.0
    %820 = vmatpush1.msra.mxu0 %v286
    %821 = vmatprep.subr.mxu0 0.0
    %822 = vmatpush1.msra.mxu0 %v291
    %823 = vmatprep.subr.mxu0 0.0
    %824 = vmatpush1.msra.mxu0 %v296
    %825 = vmatprep.subr.mxu0 0.0
    %826 = vmatpush1.msra.mxu0 %v301
    %827 = vmatprep.subr.mxu0 0.0
    %828 = vmatpush1.msra.mxu0 %v306
    %829 = vmatprep.subr.mxu0 0.0
    %830 = vmatpush1.msra.mxu0 %v311
    %831 = vmatprep.subr.mxu0 0.0
    %832 = vmatpush1.msra.mxu0 %v316
    %833 = vmatprep.subr.mxu0 0.0
    %834 = vmatpush1.msra.mxu0 0.0
    %835 = vmatprep.subr.mxu0 0.0
    %836 = vmatpush1.msra.mxu0 0.0
    %837 = vmatprep.subr.mxu0 0.0
    %838 = vmatpush1.msra.mxu0 0.0
    %839 = vmatprep.subr.mxu0 0.0
    %840 = vmatpush1.msra.mxu0 0.0
    %841 = vmatprep.subr.mxu0 0.0
    %842 = vmatpush1.msra.mxu0 0.0
    %843 = vmatprep.subr.mxu0 0.0
    %844 = vmatpush1.msra.mxu0 0.0
    %845 = vmatprep.subr.mxu0 0.0
    %846 = vmatpush1.msra.mxu0 0.0
    %847 = vmatprep.subr.mxu0 0.0
    %848 = vmatpush1.msra.mxu0 0.0
    %849 = vmatprep.subr.mxu0 0.0
    %850 = vmatpush1.msra.mxu0 0.0
    %851 = vmatprep.subr.mxu0 0.0
    %852 = vmatpush1.msra.mxu0 0.0
    %853 = vmatprep.subr.mxu0 0.0
    %854 = vmatpush1.msra.mxu0 0.0
    %855 = vmatprep.subr.mxu0 0.0
    %856 = vmatpush1.msra.mxu0 0.0
    %857 = vmatprep.subr.mxu0 0.0
    %858 = vmatpush1.msra.mxu0 0.0
    %859 = vmatprep.subr.mxu0 0.0
    %860 = vmatpush1.msra.mxu0 0.0
    %861 = vmatprep.subr.mxu0 0.0
    %862 = vmatpush1.msra.mxu0 0.0
    %863 = vmatprep.subr.mxu0 0.0
    %864 = vmatpush1.msra.mxu0 0.0
    %865 = vmatprep.mubr.f32.mxu0 0.0
    %866 = vmatmul.mubr.f32.gmra.mrb[0].mxu0 %v785
    %v867 = vpop.f32.mrb[0].mxu0
    %v868 = vadd.f32 0.0, %v867
    %v869 = vpop.f32.mrb[0].mxu0
    %870 = vmatprep.mubr.f32.mxu0 0.0
    %871 = vmatmul.mubr.f32.gmra.mrb[0].mxu0 %v786
    %v872 = vpop.f32.mrb[0].mxu0
    %v873 = vadd.f32 0.0, %v872
    %v874 = vpop.f32.mrb[0].mxu0
    %875 = vmatprep.mubr.f32.mxu0 0.0
    %876 = vmatmul.mubr.f32.gmra.mrb[0].mxu0 %v787
    %v877 = vpop.f32.mrb[0].mxu0
    %v878 = vadd.f32 0.0, %v877
    %v879 = vpop.f32.mrb[0].mxu0
    %880 = vmatprep.mubr.f32.mxu0 0.0
    %881 = vmatmul.mubr.f32.gmra.mrb[0].mxu0 %v788
    %v882 = vpop.f32.mrb[0].mxu0
    %v883 = vadd.f32 0.0, %v882
    %v884 = vpop.f32.mrb[0].mxu0
    %885 = vmatprep.mubr.f32.mxu0 0.0
    %886 = vmatmul.mubr.f32.gmra.mrb[0].mxu0 %v789
    %v887 = vpop.f32.mrb[0].mxu0
    %v888 = vadd.f32 0.0, %v887
    %v889 = vpop.f32.mrb[0].mxu0
    %890 = vmatprep.mubr.f32.mxu0 0.0
    %891 = vmatmul.mubr.f32.gmra.mrb[0].mxu0 %v790
    %v892 = vpop.f32.mrb[0].mxu0
    %v893 = vadd.f32 0.0, %v892
    %v894 = vpop.f32.mrb[0].mxu0
    %895 = vmatprep.mubr.f32.mxu0 0.0
    %896 = vmatmul.mubr.f32.gmra.mrb[0].mxu0 %v791
    %v897 = vpop.f32.mrb[0].mxu0
    %v898 = vadd.f32 0.0, %v897
    %v899 = vpop.f32.mrb[0].mxu0
    %900 = vmatprep.mubr.f32.mxu0 0.0
    %901 = vmatmul.mubr.f32.gmra.mrb[0].mxu0 %v792
    %v902 = vpop.f32.mrb[0].mxu0
    %v903 = vadd.f32 0.0, %v902
    %v904 = vpop.f32.mrb[0].mxu0
    %905 = vmatprep.mubr.f32.mxu0 0.0
    %906 = vmatmul.mubr.f32.gmra.mrb[0].mxu0 %v793
    %v907 = vpop.f32.mrb[0].mxu0
    %v908 = vadd.f32 0.0, %v907
    %v909 = vpop.f32.mrb[0].mxu0
    %910 = vmatprep.mubr.f32.mxu0 0.0
    %911 = vmatmul.mubr.f32.gmra.mrb[0].mxu0 %v794
    %v912 = vpop.f32.mrb[0].mxu0
    %v913 = vadd.f32 0.0, %v912
    %v914 = vpop.f32.mrb[0].mxu0
    %915 = vmatprep.mubr.f32.mxu0 0.0
    %916 = vmatmul.mubr.f32.gmra.mrb[0].mxu0 %v795
    %v917 = vpop.f32.mrb[0].mxu0
    %v918 = vadd.f32 0.0, %v917
    %v919 = vpop.f32.mrb[0].mxu0
    %920 = vmatprep.mubr.f32.mxu0 0.0
    %921 = vmatmul.mubr.f32.gmra.mrb[0].mxu0 %v796
    %v922 = vpop.f32.mrb[0].mxu0
    %v923 = vadd.f32 0.0, %v922
    %v924 = vpop.f32.mrb[0].mxu0
    %925 = vmatprep.mubr.f32.mxu0 0.0
    %926 = vmatmul.mubr.f32.gmra.mrb[0].mxu0 %v797
    %v927 = vpop.f32.mrb[0].mxu0
    %v928 = vadd.f32 0.0, %v927
    %v929 = vpop.f32.mrb[0].mxu0
    %930 = vmatprep.mubr.f32.mxu0 0.0
    %931 = vmatmul.mubr.f32.gmra.mrb[0].mxu0 %v798
    %v932 = vpop.f32.mrb[0].mxu0
    %v933 = vadd.f32 0.0, %v932
    %v934 = vpop.f32.mrb[0].mxu0
    %935 = vmatprep.mubr.f32.mxu0 0.0
    %936 = vmatmul.mubr.f32.gmra.mrb[0].mxu0 %v799
    %v937 = vpop.f32.mrb[0].mxu0
    %v938 = vadd.f32 0.0, %v937
    %v939 = vpop.f32.mrb[0].mxu0
    %940 = vmatprep.mubr.f32.mxu0 0.0
    %941 = vmatmul.mubr.f32.gmra.mrb[0].mxu0 %v800
    %v942 = vpop.f32.mrb[0].mxu0
    %v943 = vadd.f32 0.0, %v942
    %v944 = vpop.f32.mrb[0].mxu0
    %945 = vdwg.mxu0
    %v946 = vld [vmem:[#allocation8] sm:$0xff]
    %v947 = vld [vmem:[#allocation8 + $0x8] sm:$0xff]
    %v948 = vld [vmem:[#allocation8 + $0x10] sm:$0xff]
    %v949 = vld [vmem:[#allocation8 + $0x18] sm:$0xff]
    %v950 = vld [vmem:[#allocation8 + $0x20] sm:$0xff]
    %v951 = vld [vmem:[#allocation8 + $0x28] sm:$0xff]
    %v952 = vld [vmem:[#allocation8 + $0x30] sm:$0xff]
    %v953 = vld [vmem:[#allocation8 + $0x38] sm:$0xff]
    %v954 = vld [vmem:[#allocation8 + $0x40] sm:$0xff]
    %v955 = vld [vmem:[#allocation8 + $0x48] sm:$0xff]
    %v956 = vld [vmem:[#allocation8 + $0x50] sm:$0xff]
    %v957 = vld [vmem:[#allocation8 + $0x58] sm:$0xff]
    %v958 = vld [vmem:[#allocation8 + $0x60] sm:$0xff]
    %v959 = vld [vmem:[#allocation8 + $0x68] sm:$0xff]
    %v960 = vld [vmem:[#allocation8 + $0x70] sm:$0xff]
    %v961 = vld [vmem:[#allocation8 + $0x78] sm:$0xff]
    %v962 = vld [vmem:[%s5] sm:$0x1]
    %v963 = vld [vmem:[#allocation10] sm:$0xff]
    %v964 = vld [vmem:[#allocation10 + $0x8] sm:$0xff]
    %v965 = vld [vmem:[#allocation10 + $0x10] sm:$0xff]
    %v966 = vld [vmem:[#allocation10 + $0x18] sm:$0xff]
    %v967 = vld [vmem:[#allocation10 + $0x20] sm:$0xff]
    %v968 = vld [vmem:[#allocation10 + $0x28] sm:$0xff]
    %v969 = vld [vmem:[#allocation10 + $0x30] sm:$0xff]
    %v970 = vld [vmem:[#allocation10 + $0x38] sm:$0xff]
    %v971 = vld [vmem:[#allocation10 + $0x40] sm:$0xff]
    %v972 = vld [vmem:[#allocation10 + $0x48] sm:$0xff]
    %v973 = vld [vmem:[#allocation10 + $0x50] sm:$0xff]
    %v974 = vld [vmem:[#allocation10 + $0x58] sm:$0xff]
    %v975 = vld [vmem:[#allocation10 + $0x60] sm:$0xff]
    %v976 = vld [vmem:[#allocation10 + $0x68] sm:$0xff]
    %v977 = vld [vmem:[#allocation10 + $0x70] sm:$0xff]
    %v978 = vld [vmem:[#allocation10 + $0x78] sm:$0xff]
    %v980 = vlaneseq
    %v981 = vshrl.u32 %v980, 7
    %v982 = vsub.s32 0, %v981
    %v983 = vrot.slane %v962, %v982
    %985 = vmatprep.subr.mxu0 0.0
    %986 = vmatpush1.msra.mxu0 %v946
    %987 = vmatprep.subr.mxu0 0.0
    %988 = vmatpush1.msra.mxu0 %v947
    %989 = vmatprep.subr.mxu0 0.0
    %990 = vmatpush1.msra.mxu0 %v948
    %991 = vmatprep.subr.mxu0 0.0
    %992 = vmatpush1.msra.mxu0 %v949
    %993 = vmatprep.subr.mxu0 0.0
    %994 = vmatpush1.msra.mxu0 %v950
    %995 = vmatprep.subr.mxu0 0.0
    %996 = vmatpush1.msra.mxu0 %v951
    %997 = vmatprep.subr.mxu0 0.0
    %998 = vmatpush1.msra.mxu0 %v952
    %999 = vmatprep.subr.mxu0 0.0
    %1000 = vmatpush1.msra.mxu0 %v953
    %1001 = vmatprep.subr.mxu0 0.0
    %1002 = vmatpush1.msra.mxu0 %v954
    %1003 = vmatprep.subr.mxu0 0.0
    %1004 = vmatpush1.msra.mxu0 %v955
    %1005 = vmatprep.subr.mxu0 0.0
    %1006 = vmatpush1.msra.mxu0 %v956
    %1007 = vmatprep.subr.mxu0 0.0
    %1008 = vmatpush1.msra.mxu0 %v957
    %1009 = vmatprep.subr.mxu0 0.0
    %1010 = vmatpush1.msra.mxu0 %v958
    %1011 = vmatprep.subr.mxu0 0.0
    %1012 = vmatpush1.msra.mxu0 %v959
    %1013 = vmatprep.subr.mxu0 0.0
    %1014 = vmatpush1.msra.mxu0 %v960
    %1015 = vmatprep.subr.mxu0 0.0
    %1016 = vmatpush1.msra.mxu0 %v961
    %1017 = vmatprep.subr.mxu0 0.0
    %1018 = vmatpush1.msra.mxu0 0.0
    %1019 = vmatprep.subr.mxu0 0.0
    %1020 = vmatpush1.msra.mxu0 0.0
    %1021 = vmatprep.subr.mxu0 0.0
    %1022 = vmatpush1.msra.mxu0 0.0
    %1023 = vmatprep.subr.mxu0 0.0
    %1024 = vmatpush1.msra.mxu0 0.0
    %1025 = vmatprep.subr.mxu0 0.0
    %1026 = vmatpush1.msra.mxu0 0.0
    %1027 = vmatprep.subr.mxu0 0.0
    %1028 = vmatpush1.msra.mxu0 0.0
    %1029 = vmatprep.subr.mxu0 0.0
    %1030 = vmatpush1.msra.mxu0 0.0
    %1031 = vmatprep.subr.mxu0 0.0
    %1032 = vmatpush1.msra.mxu0 0.0
    %1033 = vmatprep.subr.mxu0 0.0
    %1034 = vmatpush1.msra.mxu0 0.0
    %1035 = vmatprep.subr.mxu0 0.0
    %1036 = vmatpush1.msra.mxu0 0.0
    %1037 = vmatprep.subr.mxu0 0.0
    %1038 = vmatpush1.msra.mxu0 0.0
    %1039 = vmatprep.subr.mxu0 0.0
    %1040 = vmatpush1.msra.mxu0 0.0
    %1041 = vmatprep.subr.mxu0 0.0
    %1042 = vmatpush1.msra.mxu0 0.0
    %1043 = vmatprep.subr.mxu0 0.0
    %1044 = vmatpush1.msra.mxu0 0.0
    %1045 = vmatprep.subr.mxu0 0.0
    %1046 = vmatpush1.msra.mxu0 0.0
    %1047 = vmatprep.subr.mxu0 0.0
    %1048 = vmatpush1.msra.mxu0 0.0
    %1049 = vmatprep.mubr.f32.mxu0 0.0
    %1050 = vmatmul.mubr.f32.gmra.mrb[0].mxu0 %v868
    %v1051 = vpop.f32.mrb[0].mxu0
    %v1052 = vadd.f32 %v983, %v1051
    %v1053 = vpop.f32.mrb[0].mxu0
    %1054 = vmatprep.mubr.f32.mxu0 0.0
    %1055 = vmatmul.mubr.f32.gmra.mrb[0].mxu0 %v873
    %v1056 = vpop.f32.mrb[0].mxu0
    %v1057 = vadd.f32 %v983, %v1056
    %v1058 = vpop.f32.mrb[0].mxu0
    %1059 = vmatprep.mubr.f32.mxu0 0.0
    %1060 = vmatmul.mubr.f32.gmra.mrb[0].mxu0 %v878
    %v1061 = vpop.f32.mrb[0].mxu0
    %v1062 = vadd.f32 %v983, %v1061
    %v1063 = vpop.f32.mrb[0].mxu0
    %1064 = vmatprep.mubr.f32.mxu0 0.0
    %1065 = vmatmul.mubr.f32.gmra.mrb[0].mxu0 %v883
    %v1066 = vpop.f32.mrb[0].mxu0
    %v1067 = vadd.f32 %v983, %v1066
    %v1068 = vpop.f32.mrb[0].mxu0
    %1069 = vmatprep.mubr.f32.mxu0 0.0
    %1070 = vmatmul.mubr.f32.gmra.mrb[0].mxu0 %v888
    %v1071 = vpop.f32.mrb[0].mxu0
    %v1072 = vadd.f32 %v983, %v1071
    %v1073 = vpop.f32.mrb[0].mxu0
    %1074 = vmatprep.mubr.f32.mxu0 0.0
    %1075 = vmatmul.mubr.f32.gmra.mrb[0].mxu0 %v893
    %v1076 = vpop.f32.mrb[0].mxu0
    %v1077 = vadd.f32 %v983, %v1076
    %v1078 = vpop.f32.mrb[0].mxu0
    %1079 = vmatprep.mubr.f32.mxu0 0.0
    %1080 = vmatmul.mubr.f32.gmra.mrb[0].mxu0 %v898
    %v1081 = vpop.f32.mrb[0].mxu0
    %v1082 = vadd.f32 %v983, %v1081
    %v1083 = vpop.f32.mrb[0].mxu0
    %1084 = vmatprep.mubr.f32.mxu0 0.0
    %1085 = vmatmul.mubr.f32.gmra.mrb[0].mxu0 %v903
    %v1086 = vpop.f32.mrb[0].mxu0
    %v1087 = vadd.f32 %v983, %v1086
    %v1088 = vpop.f32.mrb[0].mxu0
    %1089 = vmatprep.mubr.f32.mxu0 0.0
    %1090 = vmatmul.mubr.f32.gmra.mrb[0].mxu0 %v908
    %v1091 = vpop.f32.mrb[0].mxu0
    %v1092 = vadd.f32 %v983, %v1091
    %v1093 = vpop.f32.mrb[0].mxu0
    %1094 = vmatprep.mubr.f32.mxu0 0.0
    %1095 = vmatmul.mubr.f32.gmra.mrb[0].mxu0 %v913
    %v1096 = vpop.f32.mrb[0].mxu0
    %v1097 = vadd.f32 %v983, %v1096
    %v1098 = vpop.f32.mrb[0].mxu0
    %1099 = vmatprep.mubr.f32.mxu0 0.0
    %1100 = vmatmul.mubr.f32.gmra.mrb[0].mxu0 %v918
    %v1101 = vpop.f32.mrb[0].mxu0
    %v1102 = vadd.f32 %v983, %v1101
    %v1103 = vpop.f32.mrb[0].mxu0
    %1104 = vmatprep.mubr.f32.mxu0 0.0
    %1105 = vmatmul.mubr.f32.gmra.mrb[0].mxu0 %v923
    %v1106 = vpop.f32.mrb[0].mxu0
    %v1107 = vadd.f32 %v983, %v1106
    %v1108 = vpop.f32.mrb[0].mxu0
    %1109 = vmatprep.mubr.f32.mxu0 0.0
    %1110 = vmatmul.mubr.f32.gmra.mrb[0].mxu0 %v928
    %v1111 = vpop.f32.mrb[0].mxu0
    %v1112 = vadd.f32 %v983, %v1111
    %v1113 = vpop.f32.mrb[0].mxu0
    %1114 = vmatprep.mubr.f32.mxu0 0.0
    %1115 = vmatmul.mubr.f32.gmra.mrb[0].mxu0 %v933
    %v1116 = vpop.f32.mrb[0].mxu0
    %v1117 = vadd.f32 %v983, %v1116
    %v1118 = vpop.f32.mrb[0].mxu0
    %1119 = vmatprep.mubr.f32.mxu0 0.0
    %1120 = vmatmul.mubr.f32.gmra.mrb[0].mxu0 %v938
    %v1121 = vpop.f32.mrb[0].mxu0
    %v1122 = vadd.f32 %v983, %v1121
    %v1123 = vpop.f32.mrb[0].mxu0
    %1124 = vmatprep.mubr.f32.mxu0 0.0
    %1125 = vmatmul.mubr.f32.gmra.mrb[0].mxu0 %v943
    %v1126 = vpop.f32.mrb[0].mxu0
    %v1127 = vadd.f32 %v983, %v1126
    %v1128 = vpop.f32.mrb[0].mxu0
    %1129 = vdwg.mxu0
    %1130 = vmatprep.subr.mxu0 0.0
    %1131 = vmatpush1.msra.mxu0 %v963
    %1132 = vmatprep.subr.mxu0 0.0
    %1133 = vmatpush1.msra.mxu0 %v964
    %1134 = vmatprep.subr.mxu0 0.0
    %1135 = vmatpush1.msra.mxu0 %v965
    %1136 = vmatprep.subr.mxu0 0.0
    %1137 = vmatpush1.msra.mxu0 %v966
    %1138 = vmatprep.subr.mxu0 0.0
    %1139 = vmatpush1.msra.mxu0 %v967
    %1140 = vmatprep.subr.mxu0 0.0
    %1141 = vmatpush1.msra.mxu0 %v968
    %1142 = vmatprep.subr.mxu0 0.0
    %1143 = vmatpush1.msra.mxu0 %v969
    %1144 = vmatprep.subr.mxu0 0.0
    %1145 = vmatpush1.msra.mxu0 %v970
    %1146 = vmatprep.subr.mxu0 0.0
    %1147 = vmatpush1.msra.mxu0 %v971
    %1148 = vmatprep.subr.mxu0 0.0
    %1149 = vmatpush1.msra.mxu0 %v972
    %1150 = vmatprep.subr.mxu0 0.0
    %1151 = vmatpush1.msra.mxu0 %v973
    %1152 = vmatprep.subr.mxu0 0.0
    %1153 = vmatpush1.msra.mxu0 %v974
    %1154 = vmatprep.subr.mxu0 0.0
    %1155 = vmatpush1.msra.mxu0 %v975
    %1156 = vmatprep.subr.mxu0 0.0
    %1157 = vmatpush1.msra.mxu0 %v976
    %1158 = vmatprep.subr.mxu0 0.0
    %1159 = vmatpush1.msra.mxu0 %v977
    %1160 = vmatprep.subr.mxu0 0.0
    %1161 = vmatpush1.msra.mxu0 %v978
    %1162 = vmatprep.subr.mxu0 0.0
    %1163 = vmatpush1.msra.mxu0 0.0
    %1164 = vmatprep.subr.mxu0 0.0
    %1165 = vmatpush1.msra.mxu0 0.0
    %1166 = vmatprep.subr.mxu0 0.0
    %1167 = vmatpush1.msra.mxu0 0.0
    %1168 = vmatprep.subr.mxu0 0.0
    %1169 = vmatpush1.msra.mxu0 0.0
    %1170 = vmatprep.subr.mxu0 0.0
    %1171 = vmatpush1.msra.mxu0 0.0
    %1172 = vmatprep.subr.mxu0 0.0
    %1173 = vmatpush1.msra.mxu0 0.0
    %1174 = vmatprep.subr.mxu0 0.0
    %1175 = vmatpush1.msra.mxu0 0.0
    %1176 = vmatprep.subr.mxu0 0.0
    %1177 = vmatpush1.msra.mxu0 0.0
    %1178 = vmatprep.subr.mxu0 0.0
    %1179 = vmatpush1.msra.mxu0 0.0
    %1180 = vmatprep.subr.mxu0 0.0
    %1181 = vmatpush1.msra.mxu0 0.0
    %1182 = vmatprep.subr.mxu0 0.0
    %1183 = vmatpush1.msra.mxu0 0.0
    %1184 = vmatprep.subr.mxu0 0.0
    %1185 = vmatpush1.msra.mxu0 0.0
    %1186 = vmatprep.subr.mxu0 0.0
    %1187 = vmatpush1.msra.mxu0 0.0
    %1188 = vmatprep.subr.mxu0 0.0
    %1189 = vmatpush1.msra.mxu0 0.0
    %1190 = vmatprep.subr.mxu0 0.0
    %1191 = vmatpush1.msra.mxu0 0.0
    %1192 = vmatprep.subr.mxu0 0.0
    %1193 = vmatpush1.msra.mxu0 0.0
    %1194 = vmatprep.mubr.f32.mxu0 0.0
    %1195 = vmatmul.mubr.f32.gmra.mrb[0].mxu0 %v1052
    %v1196 = vpop.f32.mrb[0].mxu0
    %v1197 = vadd.f32 0.0, %v1196
    %v1198 = vpop.f32.mrb[0].mxu0
    %1199 = vmatprep.mubr.f32.mxu0 0.0
    %1200 = vmatmul.mubr.f32.gmra.mrb[0].mxu0 %v1057
    %v1201 = vpop.f32.mrb[0].mxu0
    %v1202 = vadd.f32 0.0, %v1201
    %v1203 = vpop.f32.mrb[0].mxu0
    %1204 = vmatprep.mubr.f32.mxu0 0.0
    %1205 = vmatmul.mubr.f32.gmra.mrb[0].mxu0 %v1062
    %v1206 = vpop.f32.mrb[0].mxu0
    %v1207 = vadd.f32 0.0, %v1206
    %v1208 = vpop.f32.mrb[0].mxu0
    %1209 = vmatprep.mubr.f32.mxu0 0.0
    %1210 = vmatmul.mubr.f32.gmra.mrb[0].mxu0 %v1067
    %v1211 = vpop.f32.mrb[0].mxu0
    %v1212 = vadd.f32 0.0, %v1211
    %v1213 = vpop.f32.mrb[0].mxu0
    %1214 = vmatprep.mubr.f32.mxu0 0.0
    %1215 = vmatmul.mubr.f32.gmra.mrb[0].mxu0 %v1072
    %v1216 = vpop.f32.mrb[0].mxu0
    %v1217 = vadd.f32 0.0, %v1216
    %v1218 = vpop.f32.mrb[0].mxu0
    %1219 = vmatprep.mubr.f32.mxu0 0.0
    %1220 = vmatmul.mubr.f32.gmra.mrb[0].mxu0 %v1077
    %v1221 = vpop.f32.mrb[0].mxu0
    %v1222 = vadd.f32 0.0, %v1221
    %v1223 = vpop.f32.mrb[0].mxu0
    %1224 = vmatprep.mubr.f32.mxu0 0.0
    %1225 = vmatmul.mubr.f32.gmra.mrb[0].mxu0 %v1082
    %v1226 = vpop.f32.mrb[0].mxu0
    %v1227 = vadd.f32 0.0, %v1226
    %v1228 = vpop.f32.mrb[0].mxu0
    %1229 = vmatprep.mubr.f32.mxu0 0.0
    %1230 = vmatmul.mubr.f32.gmra.mrb[0].mxu0 %v1087
    %v1231 = vpop.f32.mrb[0].mxu0
    %v1232 = vadd.f32 0.0, %v1231
    %v1233 = vpop.f32.mrb[0].mxu0
    %1234 = vmatprep.mubr.f32.mxu0 0.0
    %1235 = vmatmul.mubr.f32.gmra.mrb[0].mxu0 %v1092
    %v1236 = vpop.f32.mrb[0].mxu0
    %v1237 = vadd.f32 0.0, %v1236
    %v1238 = vpop.f32.mrb[0].mxu0
    %1239 = vmatprep.mubr.f32.mxu0 0.0
    %1240 = vmatmul.mubr.f32.gmra.mrb[0].mxu0 %v1097
    %v1241 = vpop.f32.mrb[0].mxu0
    %v1242 = vadd.f32 0.0, %v1241
    %v1243 = vpop.f32.mrb[0].mxu0
    %1244 = vmatprep.mubr.f32.mxu0 0.0
    %1245 = vmatmul.mubr.f32.gmra.mrb[0].mxu0 %v1102
    %v1246 = vpop.f32.mrb[0].mxu0
    %v1247 = vadd.f32 0.0, %v1246
    %v1248 = vpop.f32.mrb[0].mxu0
    %1249 = vmatprep.mubr.f32.mxu0 0.0
    %1250 = vmatmul.mubr.f32.gmra.mrb[0].mxu0 %v1107
    %v1251 = vpop.f32.mrb[0].mxu0
    %v1252 = vadd.f32 0.0, %v1251
    %v1253 = vpop.f32.mrb[0].mxu0
    %1254 = vmatprep.mubr.f32.mxu0 0.0
    %1255 = vmatmul.mubr.f32.gmra.mrb[0].mxu0 %v1112
    %v1256 = vpop.f32.mrb[0].mxu0
    %v1257 = vadd.f32 0.0, %v1256
    %v1258 = vpop.f32.mrb[0].mxu0
    %1259 = vmatprep.mubr.f32.mxu0 0.0
    %1260 = vmatmul.mubr.f32.gmra.mrb[0].mxu0 %v1117
    %v1261 = vpop.f32.mrb[0].mxu0
    %v1262 = vadd.f32 0.0, %v1261
    %v1263 = vpop.f32.mrb[0].mxu0
    %1264 = vmatprep.mubr.f32.mxu0 0.0
    %1265 = vmatmul.mubr.f32.gmra.mrb[0].mxu0 %v1122
    %v1266 = vpop.f32.mrb[0].mxu0
    %v1267 = vadd.f32 0.0, %v1266
    %v1268 = vpop.f32.mrb[0].mxu0
    %1269 = vmatprep.mubr.f32.mxu0 0.0
    %1270 = vmatmul.mubr.f32.gmra.mrb[0].mxu0 %v1127
    %v1271 = vpop.f32.mrb[0].mxu0
    %v1272 = vadd.f32 0.0, %v1271
    %v1273 = vpop.f32.mrb[0].mxu0
    %1274 = vdwg.mxu0
    %1275 = vmatprep.subr.mxu0 0.0
    %1276 = vmatpush1.xpose.msra.mxu0 %v1052
    %1277 = vmatprep.subr.mxu0 0.0
    %1278 = vmatpush1.xpose.msra.mxu0 %v1057
    %1279 = vmatprep.subr.mxu0 0.0
    %1280 = vmatpush1.xpose.msra.mxu0 %v1062
    %1281 = vmatprep.subr.mxu0 0.0
    %1282 = vmatpush1.xpose.msra.mxu0 %v1067
    %1283 = vmatprep.subr.mxu0 0.0
    %1284 = vmatpush1.xpose.msra.mxu0 %v1072
    %1285 = vmatprep.subr.mxu0 0.0
    %1286 = vmatpush1.xpose.msra.mxu0 %v1077
    %1287 = vmatprep.subr.mxu0 0.0
    %1288 = vmatpush1.xpose.msra.mxu0 %v1082
    %1289 = vmatprep.subr.mxu0 0.0
    %1290 = vmatpush1.xpose.msra.mxu0 %v1087
    %1291 = vmatprep.subr.mxu0 0.0
    %1292 = vmatpush1.xpose.msra.mxu0 %v1092
    %1293 = vmatprep.subr.mxu0 0.0
    %1294 = vmatpush1.xpose.msra.mxu0 %v1097
    %1295 = vmatprep.subr.mxu0 0.0
    %1296 = vmatpush1.xpose.msra.mxu0 %v1102
    %1297 = vmatprep.subr.mxu0 0.0
    %1298 = vmatpush1.xpose.msra.mxu0 %v1107
    %1299 = vmatprep.subr.mxu0 0.0
    %1300 = vmatpush1.xpose.msra.mxu0 %v1112
    %1301 = vmatprep.subr.mxu0 0.0
    %1302 = vmatpush1.xpose.msra.mxu0 %v1117
    %1303 = vmatprep.subr.mxu0 0.0
    %1304 = vmatpush1.xpose.msra.mxu0 %v1122
    %1305 = vmatprep.subr.mxu0 0.0
    %1306 = vmatpush1.xpose.msra.mxu0 %v1127
    %1307 = vmatprep.subr.mxu0 0.0
    %1308 = vmatpush1.xpose.msra.mxu0 0.0
    %1309 = vmatprep.subr.mxu0 0.0
    %1310 = vmatpush1.xpose.msra.mxu0 0.0
    %1311 = vmatprep.subr.mxu0 0.0
    %1312 = vmatpush1.xpose.msra.mxu0 0.0
    %1313 = vmatprep.subr.mxu0 0.0
    %1314 = vmatpush1.xpose.msra.mxu0 0.0
    %1315 = vmatprep.subr.mxu0 0.0
    %1316 = vmatpush1.xpose.msra.mxu0 0.0
    %1317 = vmatprep.subr.mxu0 0.0
    %1318 = vmatpush1.xpose.msra.mxu0 0.0
    %1319 = vmatprep.subr.mxu0 0.0
    %1320 = vmatpush1.xpose.msra.mxu0 0.0
    %1321 = vmatprep.subr.mxu0 0.0
    %1322 = vmatpush1.xpose.msra.mxu0 0.0
    %1323 = vmatprep.subr.mxu0 0.0
    %1324 = vmatpush1.xpose.msra.mxu0 0.0
    %1325 = vmatprep.subr.mxu0 0.0
    %1326 = vmatpush1.xpose.msra.mxu0 0.0
    %1327 = vmatprep.subr.mxu0 0.0
    %1328 = vmatpush1.xpose.msra.mxu0 0.0
    %1329 = vmatprep.subr.mxu0 0.0
    %1330 = vmatpush1.xpose.msra.mxu0 0.0
    %1331 = vmatprep.subr.mxu0 0.0
    %1332 = vmatpush1.xpose.msra.mxu0 0.0
    %1333 = vmatprep.subr.mxu0 0.0
    %1334 = vmatpush1.xpose.msra.mxu0 0.0
    %1335 = vmatprep.subr.mxu0 0.0
    %1336 = vmatpush1.xpose.msra.mxu0 0.0
    %1337 = vmatprep.subr.mxu0 0.0
    %1338 = vmatpush1.xpose.msra.mxu0 0.0
    %1339 = vmatprep.mubr.f32.mxu0 0.0
    %1340 = vmatmul.mubr.f32.gmra.mrb[0].mxu0 %v1197
    %v1341 = vpop.f32.mrb[0].mxu0
    %v1342 = vadd.f32 %v118, %v1341
    %v1343 = vpop.f32.mrb[0].mxu0
    %1344 = vmatprep.mubr.f32.mxu0 0.0
    %1345 = vmatmul.mubr.f32.gmra.mrb[0].mxu0 %v1202
    %v1346 = vpop.f32.mrb[0].mxu0
    %v1347 = vadd.f32 %v118, %v1346
    %v1348 = vpop.f32.mrb[0].mxu0
    %1349 = vmatprep.mubr.f32.mxu0 0.0
    %1350 = vmatmul.mubr.f32.gmra.mrb[0].mxu0 %v1207
    %v1351 = vpop.f32.mrb[0].mxu0
    %v1352 = vadd.f32 %v118, %v1351
    %v1353 = vpop.f32.mrb[0].mxu0
    %1354 = vmatprep.mubr.f32.mxu0 0.0
    %1355 = vmatmul.mubr.f32.gmra.mrb[0].mxu0 %v1212
    %v1356 = vpop.f32.mrb[0].mxu0
    %v1357 = vadd.f32 %v118, %v1356
    %v1358 = vpop.f32.mrb[0].mxu0
    %1359 = vmatprep.mubr.f32.mxu0 0.0
    %1360 = vmatmul.mubr.f32.gmra.mrb[0].mxu0 %v1217
    %v1361 = vpop.f32.mrb[0].mxu0
    %v1362 = vadd.f32 %v118, %v1361
    %v1363 = vpop.f32.mrb[0].mxu0
    %1364 = vmatprep.mubr.f32.mxu0 0.0
    %1365 = vmatmul.mubr.f32.gmra.mrb[0].mxu0 %v1222
    %v1366 = vpop.f32.mrb[0].mxu0
    %v1367 = vadd.f32 %v118, %v1366
    %v1368 = vpop.f32.mrb[0].mxu0
    %1369 = vmatprep.mubr.f32.mxu0 0.0
    %1370 = vmatmul.mubr.f32.gmra.mrb[0].mxu0 %v1227
    %v1371 = vpop.f32.mrb[0].mxu0
    %v1372 = vadd.f32 %v118, %v1371
    %v1373 = vpop.f32.mrb[0].mxu0
    %1374 = vmatprep.mubr.f32.mxu0 0.0
    %1375 = vmatmul.mubr.f32.gmra.mrb[0].mxu0 %v1232
    %v1376 = vpop.f32.mrb[0].mxu0
    %v1377 = vadd.f32 %v118, %v1376
    %v1378 = vpop.f32.mrb[0].mxu0
    %1379 = vmatprep.mubr.f32.mxu0 0.0
    %1380 = vmatmul.mubr.f32.gmra.mrb[0].mxu0 %v1237
    %v1381 = vpop.f32.mrb[0].mxu0
    %v1382 = vadd.f32 %v118, %v1381
    %v1383 = vpop.f32.mrb[0].mxu0
    %1384 = vmatprep.mubr.f32.mxu0 0.0
    %1385 = vmatmul.mubr.f32.gmra.mrb[0].mxu0 %v1242
    %v1386 = vpop.f32.mrb[0].mxu0
    %v1387 = vadd.f32 %v118, %v1386
    %v1388 = vpop.f32.mrb[0].mxu0
    %1389 = vmatprep.mubr.f32.mxu0 0.0
    %1390 = vmatmul.mubr.f32.gmra.mrb[0].mxu0 %v1247
    %v1391 = vpop.f32.mrb[0].mxu0
    %v1392 = vadd.f32 %v118, %v1391
    %v1393 = vpop.f32.mrb[0].mxu0
    %1394 = vmatprep.mubr.f32.mxu0 0.0
    %1395 = vmatmul.mubr.f32.gmra.mrb[0].mxu0 %v1252
    %v1396 = vpop.f32.mrb[0].mxu0
    %v1397 = vadd.f32 %v118, %v1396
    %v1398 = vpop.f32.mrb[0].mxu0
    %1399 = vmatprep.mubr.f32.mxu0 0.0
    %1400 = vmatmul.mubr.f32.gmra.mrb[0].mxu0 %v1257
    %v1401 = vpop.f32.mrb[0].mxu0
    %v1402 = vadd.f32 %v118, %v1401
    %v1403 = vpop.f32.mrb[0].mxu0
    %1404 = vmatprep.mubr.f32.mxu0 0.0
    %1405 = vmatmul.mubr.f32.gmra.mrb[0].mxu0 %v1262
    %v1406 = vpop.f32.mrb[0].mxu0
    %v1407 = vadd.f32 %v118, %v1406
    %v1408 = vpop.f32.mrb[0].mxu0
    %1409 = vmatprep.mubr.f32.mxu0 0.0
    %1410 = vmatmul.mubr.f32.gmra.mrb[0].mxu0 %v1267
    %v1411 = vpop.f32.mrb[0].mxu0
    %v1412 = vadd.f32 %v118, %v1411
    %v1413 = vpop.f32.mrb[0].mxu0
    %1414 = vmatprep.mubr.f32.mxu0 0.0
    %1415 = vmatmul.mubr.f32.gmra.mrb[0].mxu0 %v1272
    %v1416 = vpop.f32.mrb[0].mxu0
    %v1417 = vadd.f32 %v118, %v1416
    %v1418 = vpop.f32.mrb[0].mxu0
    %1419 = vdwg.mxu0
    %1420 = vmax.xlane.f32.xlu0 %v1342
    %v1421 = vpop.xlane.xlu0 %1420
    %1422 = vmax.xlane.f32.xlu0 %v1347
    %v1423 = vpop.xlane.xlu0 %1422
    %1424 = vmax.xlane.f32.xlu0 %v1352
    %v1425 = vpop.xlane.xlu0 %1424
    %1426 = vmax.xlane.f32.xlu0 %v1357
    %v1427 = vpop.xlane.xlu0 %1426
    %1428 = vmax.xlane.f32.xlu0 %v1362
    %v1429 = vpop.xlane.xlu0 %1428
    %1430 = vmax.xlane.f32.xlu0 %v1367
    %v1431 = vpop.xlane.xlu0 %1430
    %1432 = vmax.xlane.f32.xlu0 %v1372
    %v1433 = vpop.xlane.xlu0 %1432
    %1434 = vmax.xlane.f32.xlu0 %v1377
    %v1435 = vpop.xlane.xlu0 %1434
    %1436 = vmax.xlane.f32.xlu0 %v1382
    %v1437 = vpop.xlane.xlu0 %1436
    %1438 = vmax.xlane.f32.xlu0 %v1387
    %v1439 = vpop.xlane.xlu0 %1438
    %1440 = vmax.xlane.f32.xlu0 %v1392
    %v1441 = vpop.xlane.xlu0 %1440
    %1442 = vmax.xlane.f32.xlu0 %v1397
    %v1443 = vpop.xlane.xlu0 %1442
    %1444 = vmax.xlane.f32.xlu0 %v1402
    %v1445 = vpop.xlane.xlu0 %1444
    %1446 = vmax.xlane.f32.xlu0 %v1407
    %v1447 = vpop.xlane.xlu0 %1446
    %1448 = vmax.xlane.f32.xlu0 %v1412
    %v1449 = vpop.xlane.xlu0 %1448
    %1450 = vmax.xlane.f32.xlu0 %v1417
    %v1451 = vpop.xlane.xlu0 %1450
    %v1452 = vsub.f32 %v1342, %v1421
    %v1453 = vsub.f32 %v1347, %v1423
    %v1454 = vsub.f32 %v1352, %v1425
    %v1455 = vsub.f32 %v1357, %v1427
    %v1456 = vsub.f32 %v1362, %v1429
    %v1457 = vsub.f32 %v1367, %v1431
    %v1458 = vsub.f32 %v1372, %v1433
    %v1459 = vsub.f32 %v1377, %v1435
    %v1460 = vsub.f32 %v1382, %v1437
    %v1461 = vsub.f32 %v1387, %v1439
    %v1462 = vsub.f32 %v1392, %v1441
    %v1463 = vsub.f32 %v1397, %v1443
    %v1464 = vsub.f32 %v1402, %v1445
    %v1465 = vsub.f32 %v1407, %v1447
    %v1466 = vsub.f32 %v1412, %v1449
    %v1467 = vsub.f32 %v1417, %v1451
    %v1468 = vmul.f32 %v1452, 1.442695
    %v1469 = vpow.pop %v1468
    %v1470 = vmul.f32 %v1453, 1.442695
    %v1471 = vpow.pop %v1470
    %v1472 = vmul.f32 %v1454, 1.442695
    %v1473 = vpow.pop %v1472
    %v1474 = vmul.f32 %v1455, 1.442695
    %v1475 = vpow.pop %v1474
    %v1476 = vmul.f32 %v1456, 1.442695
    %v1477 = vpow.pop %v1476
    %v1478 = vmul.f32 %v1457, 1.442695
    %v1479 = vpow.pop %v1478
    %v1480 = vmul.f32 %v1458, 1.442695
    %v1481 = vpow.pop %v1480
    %v1482 = vmul.f32 %v1459, 1.442695
    %v1483 = vpow.pop %v1482
    %v1484 = vmul.f32 %v1460, 1.442695
    %v1485 = vpow.pop %v1484
    %v1486 = vmul.f32 %v1461, 1.442695
    %v1487 = vpow.pop %v1486
    %v1488 = vmul.f32 %v1462, 1.442695
    %v1489 = vpow.pop %v1488
    %v1490 = vmul.f32 %v1463, 1.442695
    %v1491 = vpow.pop %v1490
    %v1492 = vmul.f32 %v1464, 1.442695
    %v1493 = vpow.pop %v1492
    %v1494 = vmul.f32 %v1465, 1.442695
    %v1495 = vpow.pop %v1494
    %v1496 = vmul.f32 %v1466, 1.442695
    %v1497 = vpow.pop %v1496
    %v1498 = vmul.f32 %v1467, 1.442695
    %v1499 = vpow.pop %v1498
    %1500 = vadd.xlane.f32.xlu0 %v1469
    %v1501 = vpop.xlane.xlu0 %1500
    %1502 = vadd.xlane.f32.xlu0 %v1471
    %v1503 = vpop.xlane.xlu0 %1502
    %1504 = vadd.xlane.f32.xlu0 %v1473
    %v1505 = vpop.xlane.xlu0 %1504
    %1506 = vadd.xlane.f32.xlu0 %v1475
    %v1507 = vpop.xlane.xlu0 %1506
    %1508 = vadd.xlane.f32.xlu0 %v1477
    %v1509 = vpop.xlane.xlu0 %1508
    %1510 = vadd.xlane.f32.xlu0 %v1479
    %v1511 = vpop.xlane.xlu0 %1510
    %1512 = vadd.xlane.f32.xlu0 %v1481
    %v1513 = vpop.xlane.xlu0 %1512
    %1514 = vadd.xlane.f32.xlu0 %v1483
    %v1515 = vpop.xlane.xlu0 %1514
    %1516 = vadd.xlane.f32.xlu0 %v1485
    %v1517 = vpop.xlane.xlu0 %1516
    %1518 = vadd.xlane.f32.xlu0 %v1487
    %v1519 = vpop.xlane.xlu0 %1518
    %1520 = vadd.xlane.f32.xlu0 %v1489
    %v1521 = vpop.xlane.xlu0 %1520
    %1522 = vadd.xlane.f32.xlu0 %v1491
    %v1523 = vpop.xlane.xlu0 %1522
    %1524 = vadd.xlane.f32.xlu0 %v1493
    %v1525 = vpop.xlane.xlu0 %1524
    %1526 = vadd.xlane.f32.xlu0 %v1495
    %v1527 = vpop.xlane.xlu0 %1526
    %1528 = vadd.xlane.f32.xlu0 %v1497
    %v1529 = vpop.xlane.xlu0 %1528
    %1530 = vadd.xlane.f32.xlu0 %v1499
    %v1531 = vpop.xlane.xlu0 %1530
    %v1532 = vrcp.pop %v1501
    %v1533 = vrcp.pop %v1503
    %v1534 = vrcp.pop %v1505
    %v1535 = vrcp.pop %v1507
    %v1536 = vrcp.pop %v1509
    %v1537 = vrcp.pop %v1511
    %v1538 = vrcp.pop %v1513
    %v1539 = vrcp.pop %v1515
    %v1540 = vrcp.pop %v1517
    %v1541 = vrcp.pop %v1519
    %v1542 = vrcp.pop %v1521
    %v1543 = vrcp.pop %v1523
    %v1544 = vrcp.pop %v1525
    %v1545 = vrcp.pop %v1527
    %v1546 = vrcp.pop %v1529
    %v1547 = vrcp.pop %v1531
    %v1548 = vmul.f32 %v1501, %v1532
    %v1549 = vmul.f32 %v1503, %v1533
    %v1550 = vmul.f32 %v1505, %v1534
    %v1551 = vmul.f32 %v1507, %v1535
    %v1552 = vmul.f32 %v1509, %v1536
    %v1553 = vmul.f32 %v1511, %v1537
    %v1554 = vmul.f32 %v1513, %v1538
    %v1555 = vmul.f32 %v1515, %v1539
    %v1556 = vmul.f32 %v1517, %v1540
    %v1557 = vmul.f32 %v1519, %v1541
    %v1558 = vmul.f32 %v1521, %v1542
    %v1559 = vmul.f32 %v1523, %v1543
    %v1560 = vmul.f32 %v1525, %v1544
    %v1561 = vmul.f32 %v1527, %v1545
    %v1562 = vmul.f32 %v1529, %v1546
    %v1563 = vmul.f32 %v1531, %v1547
    %v1564 = vsub.f32 2.0, %v1548
    %v1565 = vsub.f32 2.0, %v1549
    %v1566 = vsub.f32 2.0, %v1550
    %v1567 = vsub.f32 2.0, %v1551
    %v1568 = vsub.f32 2.0, %v1552
    %v1569 = vsub.f32 2.0, %v1553
    %v1570 = vsub.f32 2.0, %v1554
    %v1571 = vsub.f32 2.0, %v1555
    %v1572 = vsub.f32 2.0, %v1556
    %v1573 = vsub.f32 2.0, %v1557
    %v1574 = vsub.f32 2.0, %v1558
    %v1575 = vsub.f32 2.0, %v1559
    %v1576 = vsub.f32 2.0, %v1560
    %v1577 = vsub.f32 2.0, %v1561
    %v1578 = vsub.f32 2.0, %v1562
    %v1579 = vsub.f32 2.0, %v1563
    %v1580 = vmul.f32 %v1532, %v1564
    %v1581 = vmul.f32 %v1533, %v1565
    %v1582 = vmul.f32 %v1534, %v1566
    %v1583 = vmul.f32 %v1535, %v1567
    %v1584 = vmul.f32 %v1536, %v1568
    %v1585 = vmul.f32 %v1537, %v1569
    %v1586 = vmul.f32 %v1538, %v1570
    %v1587 = vmul.f32 %v1539, %v1571
    %v1588 = vmul.f32 %v1540, %v1572
    %v1589 = vmul.f32 %v1541, %v1573
    %v1590 = vmul.f32 %v1542, %v1574
    %v1591 = vmul.f32 %v1543, %v1575
    %v1592 = vmul.f32 %v1544, %v1576
    %v1593 = vmul.f32 %v1545, %v1577
    %v1594 = vmul.f32 %v1546, %v1578
    %v1595 = vmul.f32 %v1547, %v1579
    %v1596 = vmul.f32 %v1469, %v1580
    %v1597 = vmul.f32 %v1471, %v1581
    %v1598 = vmul.f32 %v1473, %v1582
    %v1599 = vmul.f32 %v1475, %v1583
    %v1600 = vmul.f32 %v1477, %v1584
    %v1601 = vmul.f32 %v1479, %v1585
    %v1602 = vmul.f32 %v1481, %v1586
    %v1603 = vmul.f32 %v1483, %v1587
    %v1604 = vmul.f32 %v1485, %v1588
    %v1605 = vmul.f32 %v1487, %v1589
    %v1606 = vmul.f32 %v1489, %v1590
    %v1607 = vmul.f32 %v1491, %v1591
    %v1608 = vmul.f32 %v1493, %v1592
    %v1609 = vmul.f32 %v1495, %v1593
    %v1610 = vmul.f32 %v1497, %v1594
    %v1611 = vmul.f32 %v1499, %v1595
    %1612 = vmatprep.subr.mxu0 0.0
    %1613 = vmatpush1.msra.mxu0 %v1052
    %1614 = vmatprep.subr.mxu0 0.0
    %1615 = vmatpush1.msra.mxu0 %v1057
    %1616 = vmatprep.subr.mxu0 0.0
    %1617 = vmatpush1.msra.mxu0 %v1062
    %1618 = vmatprep.subr.mxu0 0.0
    %1619 = vmatpush1.msra.mxu0 %v1067
    %1620 = vmatprep.subr.mxu0 0.0
    %1621 = vmatpush1.msra.mxu0 %v1072
    %1622 = vmatprep.subr.mxu0 0.0
    %1623 = vmatpush1.msra.mxu0 %v1077
    %1624 = vmatprep.subr.mxu0 0.0
    %1625 = vmatpush1.msra.mxu0 %v1082
    %1626 = vmatprep.subr.mxu0 0.0
    %1627 = vmatpush1.msra.mxu0 %v1087
    %1628 = vmatprep.subr.mxu0 0.0
    %1629 = vmatpush1.msra.mxu0 %v1092
    %1630 = vmatprep.subr.mxu0 0.0
    %1631 = vmatpush1.msra.mxu0 %v1097
    %1632 = vmatprep.subr.mxu0 0.0
    %1633 = vmatpush1.msra.mxu0 %v1102
    %1634 = vmatprep.subr.mxu0 0.0
    %1635 = vmatpush1.msra.mxu0 %v1107
    %1636 = vmatprep.subr.mxu0 0.0
    %1637 = vmatpush1.msra.mxu0 %v1112
    %1638 = vmatprep.subr.mxu0 0.0
    %1639 = vmatpush1.msra.mxu0 %v1117
    %1640 = vmatprep.subr.mxu0 0.0
    %1641 = vmatpush1.msra.mxu0 %v1122
    %1642 = vmatprep.subr.mxu0 0.0
    %1643 = vmatpush1.msra.mxu0 %v1127
    %1644 = vmatprep.subr.mxu0 0.0
    %1645 = vmatpush1.msra.mxu0 0.0
    %1646 = vmatprep.subr.mxu0 0.0
    %1647 = vmatpush1.msra.mxu0 0.0
    %1648 = vmatprep.subr.mxu0 0.0
    %1649 = vmatpush1.msra.mxu0 0.0
    %1650 = vmatprep.subr.mxu0 0.0
    %1651 = vmatpush1.msra.mxu0 0.0
    %1652 = vmatprep.subr.mxu0 0.0
    %1653 = vmatpush1.msra.mxu0 0.0
    %1654 = vmatprep.subr.mxu0 0.0
    %1655 = vmatpush1.msra.mxu0 0.0
    %1656 = vmatprep.subr.mxu0 0.0
    %1657 = vmatpush1.msra.mxu0 0.0
    %1658 = vmatprep.subr.mxu0 0.0
    %1659 = vmatpush1.msra.mxu0 0.0
    %1660 = vmatprep.subr.mxu0 0.0
    %1661 = vmatpush1.msra.mxu0 0.0
    %1662 = vmatprep.subr.mxu0 0.0
    %1663 = vmatpush1.msra.mxu0 0.0
    %1664 = vmatprep.subr.mxu0 0.0
    %1665 = vmatpush1.msra.mxu0 0.0
    %1666 = vmatprep.subr.mxu0 0.0
    %1667 = vmatpush1.msra.mxu0 0.0
    %1668 = vmatprep.subr.mxu0 0.0
    %1669 = vmatpush1.msra.mxu0 0.0
    %1670 = vmatprep.subr.mxu0 0.0
    %1671 = vmatpush1.msra.mxu0 0.0
    %1672 = vmatprep.subr.mxu0 0.0
    %1673 = vmatpush1.msra.mxu0 0.0
    %1674 = vmatprep.subr.mxu0 0.0
    %1675 = vmatpush1.msra.mxu0 0.0
    %1676 = vmatprep.mubr.f32.mxu0 0.0
    %1677 = vmatmul.mubr.f32.gmra.mrb[0].mxu0 %v1596
    %v1678 = vpop.f32.mrb[0].mxu0
    %v1679 = vadd.f32 0.0, %v1678
    %v1680 = vpop.f32.mrb[0].mxu0
    %1681 = vmatprep.mubr.f32.mxu0 0.0
    %1682 = vmatmul.mubr.f32.gmra.mrb[0].mxu0 %v1597
    %v1683 = vpop.f32.mrb[0].mxu0
    %v1684 = vadd.f32 0.0, %v1683
    %v1685 = vpop.f32.mrb[0].mxu0
    %1686 = vmatprep.mubr.f32.mxu0 0.0
    %1687 = vmatmul.mubr.f32.gmra.mrb[0].mxu0 %v1598
    %v1688 = vpop.f32.mrb[0].mxu0
    %v1689 = vadd.f32 0.0, %v1688
    %v1690 = vpop.f32.mrb[0].mxu0
    %1691 = vmatprep.mubr.f32.mxu0 0.0
    %1692 = vmatmul.mubr.f32.gmra.mrb[0].mxu0 %v1599
    %v1693 = vpop.f32.mrb[0].mxu0
    %v1694 = vadd.f32 0.0, %v1693
    %v1695 = vpop.f32.mrb[0].mxu0
    %1696 = vmatprep.mubr.f32.mxu0 0.0
    %1697 = vmatmul.mubr.f32.gmra.mrb[0].mxu0 %v1600
    %v1698 = vpop.f32.mrb[0].mxu0
    %v1699 = vadd.f32 0.0, %v1698
    %v1700 = vpop.f32.mrb[0].mxu0
    %1701 = vmatprep.mubr.f32.mxu0 0.0
    %1702 = vmatmul.mubr.f32.gmra.mrb[0].mxu0 %v1601
    %v1703 = vpop.f32.mrb[0].mxu0
    %v1704 = vadd.f32 0.0, %v1703
    %v1705 = vpop.f32.mrb[0].mxu0
    %1706 = vmatprep.mubr.f32.mxu0 0.0
    %1707 = vmatmul.mubr.f32.gmra.mrb[0].mxu0 %v1602
    %v1708 = vpop.f32.mrb[0].mxu0
    %v1709 = vadd.f32 0.0, %v1708
    %v1710 = vpop.f32.mrb[0].mxu0
    %1711 = vmatprep.mubr.f32.mxu0 0.0
    %1712 = vmatmul.mubr.f32.gmra.mrb[0].mxu0 %v1603
    %v1713 = vpop.f32.mrb[0].mxu0
    %v1714 = vadd.f32 0.0, %v1713
    %v1715 = vpop.f32.mrb[0].mxu0
    %1716 = vmatprep.mubr.f32.mxu0 0.0
    %1717 = vmatmul.mubr.f32.gmra.mrb[0].mxu0 %v1604
    %v1718 = vpop.f32.mrb[0].mxu0
    %v1719 = vadd.f32 0.0, %v1718
    %v1720 = vpop.f32.mrb[0].mxu0
    %1721 = vmatprep.mubr.f32.mxu0 0.0
    %1722 = vmatmul.mubr.f32.gmra.mrb[0].mxu0 %v1605
    %v1723 = vpop.f32.mrb[0].mxu0
    %v1724 = vadd.f32 0.0, %v1723
    %v1725 = vpop.f32.mrb[0].mxu0
    %1726 = vmatprep.mubr.f32.mxu0 0.0
    %1727 = vmatmul.mubr.f32.gmra.mrb[0].mxu0 %v1606
    %v1728 = vpop.f32.mrb[0].mxu0
    %v1729 = vadd.f32 0.0, %v1728
    %v1730 = vpop.f32.mrb[0].mxu0
    %1731 = vmatprep.mubr.f32.mxu0 0.0
    %1732 = vmatmul.mubr.f32.gmra.mrb[0].mxu0 %v1607
    %v1733 = vpop.f32.mrb[0].mxu0
    %v1734 = vadd.f32 0.0, %v1733
    %v1735 = vpop.f32.mrb[0].mxu0
    %1736 = vmatprep.mubr.f32.mxu0 0.0
    %1737 = vmatmul.mubr.f32.gmra.mrb[0].mxu0 %v1608
    %v1738 = vpop.f32.mrb[0].mxu0
    %v1739 = vadd.f32 0.0, %v1738
    %v1740 = vpop.f32.mrb[0].mxu0
    %1741 = vmatprep.mubr.f32.mxu0 0.0
    %1742 = vmatmul.mubr.f32.gmra.mrb[0].mxu0 %v1609
    %v1743 = vpop.f32.mrb[0].mxu0
    %v1744 = vadd.f32 0.0, %v1743
    %v1745 = vpop.f32.mrb[0].mxu0
    %1746 = vmatprep.mubr.f32.mxu0 0.0
    %1747 = vmatmul.mubr.f32.gmra.mrb[0].mxu0 %v1610
    %v1748 = vpop.f32.mrb[0].mxu0
    %v1749 = vadd.f32 0.0, %v1748
    %v1750 = vpop.f32.mrb[0].mxu0
    %1751 = vmatprep.mubr.f32.mxu0 0.0
    %1752 = vmatmul.mubr.f32.gmra.mrb[0].mxu0 %v1611
    %v1753 = vpop.f32.mrb[0].mxu0
    %v1754 = vadd.f32 0.0, %v1753
    %v1755 = vpop.f32.mrb[0].mxu0
    %1756 = vdwg.mxu0
    %v1757 = vld [vmem:[#allocation11] sm:$0xff]
    %v1758 = vld [vmem:[#allocation11 + $0x8] sm:$0xff]
    %v1759 = vld [vmem:[#allocation11 + $0x10] sm:$0xff]
    %v1760 = vld [vmem:[#allocation11 + $0x18] sm:$0xff]
    %v1761 = vld [vmem:[#allocation11 + $0x20] sm:$0xff]
    %v1762 = vld [vmem:[#allocation11 + $0x28] sm:$0xff]
    %v1763 = vld [vmem:[#allocation11 + $0x30] sm:$0xff]
    %v1764 = vld [vmem:[#allocation11 + $0x38] sm:$0xff]
    %v1765 = vld [vmem:[#allocation11 + $0x40] sm:$0xff]
    %v1766 = vld [vmem:[#allocation11 + $0x48] sm:$0xff]
    %v1767 = vld [vmem:[#allocation11 + $0x50] sm:$0xff]
    %v1768 = vld [vmem:[#allocation11 + $0x58] sm:$0xff]
    %v1769 = vld [vmem:[#allocation11 + $0x60] sm:$0xff]
    %v1770 = vld [vmem:[#allocation11 + $0x68] sm:$0xff]
    %v1771 = vld [vmem:[#allocation11 + $0x70] sm:$0xff]
    %v1772 = vld [vmem:[#allocation11 + $0x78] sm:$0xff]
    %v1773 = vld [vmem:[%s8] sm:$0x1]
    %v1775 = vlaneseq
    %v1776 = vshrl.u32 %v1775, 7
    %v1777 = vsub.s32 0, %v1776
    %v1778 = vrot.slane %v1773, %v1777
    %1780 = vmatprep.subr.mxu0 0.0
    %1781 = vmatpush1.msra.mxu0 %v1757
    %1782 = vmatprep.subr.mxu0 0.0
    %1783 = vmatpush1.msra.mxu0 %v1758
    %1784 = vmatprep.subr.mxu0 0.0
    %1785 = vmatpush1.msra.mxu0 %v1759
    %1786 = vmatprep.subr.mxu0 0.0
    %1787 = vmatpush1.msra.mxu0 %v1760
    %1788 = vmatprep.subr.mxu0 0.0
    %1789 = vmatpush1.msra.mxu0 %v1761
    %1790 = vmatprep.subr.mxu0 0.0
    %1791 = vmatpush1.msra.mxu0 %v1762
    %1792 = vmatprep.subr.mxu0 0.0
    %1793 = vmatpush1.msra.mxu0 %v1763
    %1794 = vmatprep.subr.mxu0 0.0
    %1795 = vmatpush1.msra.mxu0 %v1764
    %1796 = vmatprep.subr.mxu0 0.0
    %1797 = vmatpush1.msra.mxu0 %v1765
    %1798 = vmatprep.subr.mxu0 0.0
    %1799 = vmatpush1.msra.mxu0 %v1766
    %1800 = vmatprep.subr.mxu0 0.0
    %1801 = vmatpush1.msra.mxu0 %v1767
    %1802 = vmatprep.subr.mxu0 0.0
    %1803 = vmatpush1.msra.mxu0 %v1768
    %1804 = vmatprep.subr.mxu0 0.0
    %1805 = vmatpush1.msra.mxu0 %v1769
    %1806 = vmatprep.subr.mxu0 0.0
    %1807 = vmatpush1.msra.mxu0 %v1770
    %1808 = vmatprep.subr.mxu0 0.0
    %1809 = vmatpush1.msra.mxu0 %v1771
    %1810 = vmatprep.subr.mxu0 0.0
    %1811 = vmatpush1.msra.mxu0 %v1772
    %1812 = vmatprep.subr.mxu0 0.0
    %1813 = vmatpush1.msra.mxu0 0.0
    %1814 = vmatprep.subr.mxu0 0.0
    %1815 = vmatpush1.msra.mxu0 0.0
    %1816 = vmatprep.subr.mxu0 0.0
    %1817 = vmatpush1.msra.mxu0 0.0
    %1818 = vmatprep.subr.mxu0 0.0
    %1819 = vmatpush1.msra.mxu0 0.0
    %1820 = vmatprep.subr.mxu0 0.0
    %1821 = vmatpush1.msra.mxu0 0.0
    %1822 = vmatprep.subr.mxu0 0.0
    %1823 = vmatpush1.msra.mxu0 0.0
    %1824 = vmatprep.subr.mxu0 0.0
    %1825 = vmatpush1.msra.mxu0 0.0
    %1826 = vmatprep.subr.mxu0 0.0
    %1827 = vmatpush1.msra.mxu0 0.0
    %1828 = vmatprep.subr.mxu0 0.0
    %1829 = vmatpush1.msra.mxu0 0.0
    %1830 = vmatprep.subr.mxu0 0.0
    %1831 = vmatpush1.msra.mxu0 0.0
    %1832 = vmatprep.subr.mxu0 0.0
    %1833 = vmatpush1.msra.mxu0 0.0
    %1834 = vmatprep.subr.mxu0 0.0
    %1835 = vmatpush1.msra.mxu0 0.0
    %1836 = vmatprep.subr.mxu0 0.0
    %1837 = vmatpush1.msra.mxu0 0.0
    %1838 = vmatprep.subr.mxu0 0.0
    %1839 = vmatpush1.msra.mxu0 0.0
    %1840 = vmatprep.subr.mxu0 0.0
    %1841 = vmatpush1.msra.mxu0 0.0
    %1842 = vmatprep.subr.mxu0 0.0
    %1843 = vmatpush1.msra.mxu0 0.0
    %1844 = vmatprep.mubr.f32.mxu0 0.0
    %1845 = vmatmul.mubr.f32.gmra.mrb[0].mxu0 %v1679
    %v1846 = vpop.f32.mrb[0].mxu0
    %v1847 = vadd.f32 %v1778, %v1846
    %v1848 = vpop.f32.mrb[0].mxu0
    %1849 = vmatprep.mubr.f32.mxu0 0.0
    %1850 = vmatmul.mubr.f32.gmra.mrb[0].mxu0 %v1684
    %v1851 = vpop.f32.mrb[0].mxu0
    %v1852 = vadd.f32 %v1778, %v1851
    %v1853 = vpop.f32.mrb[0].mxu0
    %1854 = vmatprep.mubr.f32.mxu0 0.0
    %1855 = vmatmul.mubr.f32.gmra.mrb[0].mxu0 %v1689
    %v1856 = vpop.f32.mrb[0].mxu0
    %v1857 = vadd.f32 %v1778, %v1856
    %v1858 = vpop.f32.mrb[0].mxu0
    %1859 = vmatprep.mubr.f32.mxu0 0.0
    %1860 = vmatmul.mubr.f32.gmra.mrb[0].mxu0 %v1694
    %v1861 = vpop.f32.mrb[0].mxu0
    %v1862 = vadd.f32 %v1778, %v1861
    %v1863 = vpop.f32.mrb[0].mxu0
    %1864 = vmatprep.mubr.f32.mxu0 0.0
    %1865 = vmatmul.mubr.f32.gmra.mrb[0].mxu0 %v1699
    %v1866 = vpop.f32.mrb[0].mxu0
    %v1867 = vadd.f32 %v1778, %v1866
    %v1868 = vpop.f32.mrb[0].mxu0
    %1869 = vmatprep.mubr.f32.mxu0 0.0
    %1870 = vmatmul.mubr.f32.gmra.mrb[0].mxu0 %v1704
    %v1871 = vpop.f32.mrb[0].mxu0
    %v1872 = vadd.f32 %v1778, %v1871
    %v1873 = vpop.f32.mrb[0].mxu0
    %1874 = vmatprep.mubr.f32.mxu0 0.0
    %1875 = vmatmul.mubr.f32.gmra.mrb[0].mxu0 %v1709
    %v1876 = vpop.f32.mrb[0].mxu0
    %v1877 = vadd.f32 %v1778, %v1876
    %v1878 = vpop.f32.mrb[0].mxu0
    %1879 = vmatprep.mubr.f32.mxu0 0.0
    %1880 = vmatmul.mubr.f32.gmra.mrb[0].mxu0 %v1714
    %v1881 = vpop.f32.mrb[0].mxu0
    %v1882 = vadd.f32 %v1778, %v1881
    %v1883 = vpop.f32.mrb[0].mxu0
    %1884 = vmatprep.mubr.f32.mxu0 0.0
    %1885 = vmatmul.mubr.f32.gmra.mrb[0].mxu0 %v1719
    %v1886 = vpop.f32.mrb[0].mxu0
    %v1887 = vadd.f32 %v1778, %v1886
    %v1888 = vpop.f32.mrb[0].mxu0
    %1889 = vmatprep.mubr.f32.mxu0 0.0
    %1890 = vmatmul.mubr.f32.gmra.mrb[0].mxu0 %v1724
    %v1891 = vpop.f32.mrb[0].mxu0
    %v1892 = vadd.f32 %v1778, %v1891
    %v1893 = vpop.f32.mrb[0].mxu0
    %1894 = vmatprep.mubr.f32.mxu0 0.0
    %1895 = vmatmul.mubr.f32.gmra.mrb[0].mxu0 %v1729
    %v1896 = vpop.f32.mrb[0].mxu0
    %v1897 = vadd.f32 %v1778, %v1896
    %v1898 = vpop.f32.mrb[0].mxu0
    %1899 = vmatprep.mubr.f32.mxu0 0.0
    %1900 = vmatmul.mubr.f32.gmra.mrb[0].mxu0 %v1734
    %v1901 = vpop.f32.mrb[0].mxu0
    %v1902 = vadd.f32 %v1778, %v1901
    %v1903 = vpop.f32.mrb[0].mxu0
    %1904 = vmatprep.mubr.f32.mxu0 0.0
    %1905 = vmatmul.mubr.f32.gmra.mrb[0].mxu0 %v1739
    %v1906 = vpop.f32.mrb[0].mxu0
    %v1907 = vadd.f32 %v1778, %v1906
    %v1908 = vpop.f32.mrb[0].mxu0
    %1909 = vmatprep.mubr.f32.mxu0 0.0
    %1910 = vmatmul.mubr.f32.gmra.mrb[0].mxu0 %v1744
    %v1911 = vpop.f32.mrb[0].mxu0
    %v1912 = vadd.f32 %v1778, %v1911
    %v1913 = vpop.f32.mrb[0].mxu0
    %1914 = vmatprep.mubr.f32.mxu0 0.0
    %1915 = vmatmul.mubr.f32.gmra.mrb[0].mxu0 %v1749
    %v1916 = vpop.f32.mrb[0].mxu0
    %v1917 = vadd.f32 %v1778, %v1916
    %v1918 = vpop.f32.mrb[0].mxu0
    %1919 = vmatprep.mubr.f32.mxu0 0.0
    %1920 = vmatmul.mubr.f32.gmra.mrb[0].mxu0 %v1754
    %v1921 = vpop.f32.mrb[0].mxu0
    %v1922 = vadd.f32 %v1778, %v1921
    %v1923 = vpop.f32.mrb[0].mxu0
    %1924 = vdwg.mxu0
    %1925 = vst [vmem:[#allocation13] sm:$0xff] %v1847
    %1926 = vst [vmem:[#allocation13 + $0x8] sm:$0xff] %v1852
    %1927 = vst [vmem:[#allocation13 + $0x10] sm:$0xff] %v1857
    %1928 = vst [vmem:[#allocation13 + $0x18] sm:$0xff] %v1862
    %1929 = vst [vmem:[#allocation13 + $0x20] sm:$0xff] %v1867
    %1930 = vst [vmem:[#allocation13 + $0x28] sm:$0xff] %v1872
    %1931 = vst [vmem:[#allocation13 + $0x30] sm:$0xff] %v1877
    %1932 = vst [vmem:[#allocation13 + $0x38] sm:$0xff] %v1882
    %1933 = vst [vmem:[#allocation13 + $0x40] sm:$0xff] %v1887
    %1934 = vst [vmem:[#allocation13 + $0x48] sm:$0xff] %v1892
    %1935 = vst [vmem:[#allocation13 + $0x50] sm:$0xff] %v1897
    %1936 = vst [vmem:[#allocation13 + $0x58] sm:$0xff] %v1902
    %1937 = vst [vmem:[#allocation13 + $0x60] sm:$0xff] %v1907
    %1938 = vst [vmem:[#allocation13 + $0x68] sm:$0xff] %v1912
    %1939 = vst [vmem:[#allocation13 + $0x70] sm:$0xff] %v1917
    %1940 = vst [vmem:[#allocation13 + $0x78] sm:$0xff] %v1922
    // Predicated region
    $region62: #{tpu_custom_call.1} parent=1 // pred_check
      _
    $region63: #{tpu_custom_call.1} parent=1 // pred_check_branch
      %1942 = sbr.rel (0) target = $region65
    $region64: #{tpu_custom_call.1} parent=1 // pred_region
      %s1944 = ssub.s32 2048, 2048
      %1945 = vsyncadd [#allocation4], %s1944
      %s1946 = sshll.u32 [#allocation13], 4
      %s1947 = int_to_ptr.vmem [resolvable:$true] %s1946
      %1952 = dma.vmem_to_hbm [thread:$0]  %s1947, 2048, %s9, [#allocation4], 128, 128, 8
    $region65: #{tpu_custom_call.1} parent=1 // pred_fallthru
      _
    // Predicated region
    $region66: #{tpu_custom_call.1} parent=1 // pred_check
      _
    $region67: #{tpu_custom_call.1} parent=1 // pred_check_branch
      %1954 = sbr.rel (0) target = $region69
    $region68: #{tpu_custom_call.1} parent=1 // pred_region
      %1955 = dma.done [#allocation4], 2048
    $region69: #{tpu_custom_call.1} parent=1 // pred_fallthru
      _
    %1956 = vsyncpa [#allocation3], 1
    %1957 = vsyncpa [#allocation6], 1
    %1958 = vsyncpa [#allocation9], 1
    %1959 = vsyncpa [#allocation12], 1
    %1960 = vsyncpa [#allocation4], 1

</llo_original>
